<compile_context>
chip_gen: v5e
topology: v5e:2x2
jax: 0.10.0
libtpu: 0.0.40
codegen_flags: <defaults>
</compile_context>

<pallas_src>
import jax
import jax.numpy as jnp
from jax import lax
from jax.experimental import pallas as pl
from jax.experimental.pallas import tpu as pltpu


def _decoder_attn_kernel(
    x_ref,      # (TB, S, H)   encoded inputs, TB batch rows
    h0_ref,     # (TB, 1, H)   initial hidden state
    mask_ref,   # (TB, S, 1)   additive mask (0 valid, -1e30 padding)
    wxT_ref,    # (H, H)       W[:, :H].T  (input half of attn W)
    whT_ref,    # (H, H)       W[:, H:].T  (hidden half of attn W)
    bw_ref,     # (1, H)       attn W bias
    vcol_ref,   # (1, H)       V_w.sum(axis=0)  (V_b dropped: softmax shift-inv)
    wihT_ref,   # (H, 3H)      GRU input weights, fused r|z|n
    whhT_ref,   # (H, 3H)      GRU hidden weights, fused r|z|n
    bgi_ref,    # (1, 3H)      [b_ir+b_hr | b_iz+b_hz | b_in]
    bhn_ref,    # (1, H)       b_hn (kept separate: lives inside r*(.))
    out_ref,    # (TB, 1, S*H) GRU outputs, lane-dense slab
):
    TB, S, H = x_ref.shape

    x = x_ref[...]                        # (TB, S, H)
    h0 = h0_ref[:, 0, :]                  # (TB, H)

    # ---------------- attention (Bahdanau, single layer) ----------------
    pre_x = jnp.dot(x.reshape(TB * S, H), wxT_ref[...],
                    preferred_element_type=jnp.float32)                 # (TB*S, H)
    pre_h = jnp.dot(h0, whT_ref[...],
                    preferred_element_type=jnp.float32) + bw_ref[...]   # (TB, H)
    pre = pre_x.reshape(TB, S, H) + pre_h[:, None, :]
    t = jnp.tanh(pre)
    score = jnp.sum(t * vcol_ref[...], axis=-1, keepdims=True)          # (TB, S, 1)
    score = score + mask_ref[...]                                       # additive mask

    m = jnp.max(score, axis=1, keepdims=True)                           # (TB, 1, 1)
    e = jnp.exp(score - m)
    denom = jnp.sum(e, axis=1, keepdims=True)
    attn_w = e * pl.reciprocal(denom, approx=True)                      # (TB, S, 1)
    attn_out = attn_w * x                                               # (TB, S, H)

    # ---------------- GRU recurrence (PyTorch gate order r, z, n) -------
    # Hoisted input-gate projections: ONE fused matmul for all gates & steps.
    gi = jnp.dot(attn_out.reshape(TB * S, H), wihT_ref[...],
                 preferred_element_type=jnp.float32) + bgi_ref[...]     # (TB*S, 3H)
    gi = gi.reshape(TB, S, 3 * H)

    whh = whhT_ref[...]                   # (H, 3H)
    bhn = bhn_ref[...]                    # (1, H)

    h = h0                                # (TB, H)
    outs = []
    for ti in range(S):                   # fully unrolled, static indices
        gh = jnp.dot(h, whh, preferred_element_type=jnp.float32)        # (TB, 3H)
        gi_t = gi[:, ti, :]                                             # (TB, 3H)
        r = jax.nn.sigmoid(gi_t[:, :H] + gh[:, :H])
        z = jax.nn.sigmoid(gi_t[:, H:2 * H] + gh[:, H:2 * H])
        n = jnp.tanh(gi_t[:, 2 * H:] + r * (gh[:, 2 * H:] + bhn))
        h = (1.0 - z) * n + z * h
        outs.append(h)

    # Lane-dense single store: (TB, S*H) slab, last dim S*H (>=128 lanes).
    out_ref[...] = jnp.concatenate(outs, axis=-1)[:, None, :]


def prepare_params(params, H):
    """One-time parameter preprocessing (transposes / fusion), hoisted out of
    the per-call path."""
    W_w, W_b = params["W_w"], params["W_b"]          # (H, 2H), (H,)
    V_w = params["V_w"]                              # (H, H); V_b not needed
    w_ih, w_hh = params["w_ih"], params["w_hh"]      # (3H, H)
    b_ih, b_hh = params["b_ih"], params["b_hh"]      # (3H,)

    bgi = jnp.concatenate([
        b_ih[:H] + b_hh[:H],                 # r: biases fold
        b_ih[H:2 * H] + b_hh[H:2 * H],       # z: biases fold
        b_ih[2 * H:],                        # n: only input bias folds
    ])[None, :]                                                      # (1, 3H)
    return {
        "wxT": W_w[:, :H].T,                 # (H, H)
        "whT": W_w[:, H:].T,                 # (H, H)
        "bw": W_b[None, :],                  # (1, H)
        "vcol": jnp.sum(V_w, axis=0)[None, :],   # (1, H)
        "wihT": w_ih.T,                      # (H, 3H), fused r|z|n
        "whhT": w_hh.T,                      # (H, 3H), fused r|z|n
        "bgi": bgi,                          # (1, 3H)
        "bhn": b_hh[2 * H:][None, :],        # (1, H)
    }


@jax.jit
def decoder_attn_forward(inputs, hidden_states, mask, prep):
    """inputs: (B,S,H) f32, hidden_states: (1,B,H) f32, mask: (B,S) int."""
    B, S, H = inputs.shape

    # NP programs x TB rows each.  NP=2 keeps both v7x TensorCores busy; on
    # single-core v5e/v6e the extra grid step is ~0.35 us (negligible).
    NP = 2 if (B >= 2 and B % 2 == 0) else 1
    TB = B // NP

    h0 = hidden_states[0][:, None, :]                                   # (B, 1, H)
    mask_add = jnp.where(mask[..., None] == 0, -1e30, 0.0).astype(jnp.float32)  # (B,S,1)

    out_flat = pl.pallas_call(
        _decoder_attn_kernel,
        out_shape=jax.ShapeDtypeStruct((B, 1, S * H), jnp.float32),
        grid=(NP,),
        in_specs=[
            pl.BlockSpec((TB, S, H), lambda b: (b, 0, 0)),   # x
            pl.BlockSpec((TB, 1, H), lambda b: (b, 0, 0)),   # h0
            pl.BlockSpec((TB, S, 1), lambda b: (b, 0, 0)),   # additive mask
            pl.BlockSpec((H, H), lambda b: (0, 0)),          # wxT
            pl.BlockSpec((H, H), lambda b: (0, 0)),          # whT
            pl.BlockSpec((1, H), lambda b: (0, 0)),          # bw
            pl.BlockSpec((1, H), lambda b: (0, 0)),          # vcol
            pl.BlockSpec((H, 3 * H), lambda b: (0, 0)),      # wihT (fused)
            pl.BlockSpec((H, 3 * H), lambda b: (0, 0)),      # whhT (fused)
            pl.BlockSpec((1, 3 * H), lambda b: (0, 0)),      # bgi
            pl.BlockSpec((1, H), lambda b: (0, 0)),          # bhn
        ],
        out_specs=pl.BlockSpec((TB, 1, S * H), lambda b: (b, 0, 0)),
        compiler_params=pltpu.CompilerParams(
            dimension_semantics=("parallel",)),
    )(inputs, h0, mask_add, prep["wxT"], prep["whT"], prep["bw"], prep["vcol"],
      prep["wihT"], prep["whhT"], prep["bgi"], prep["bhn"])

    gru_out = out_flat.reshape(B, S, H)
    # Single-layer GRU: final hidden state == last output row (free slice).
    gru_hid = gru_out[:, -1, :][None]                                   # (1, B, H)
    return gru_out, gru_hid


def _reference_forward(inputs, hidden_states, mask, params):
    """Pure-JAX reference mirroring the PyTorch module (num_layers=1)."""
    B, S, H = inputs.shape
    h0 = hidden_states[0]
    cat = jnp.concatenate(
        [inputs, jnp.broadcast_to(h0[:, None, :], (B, S, H))], axis=-1)
    t = jnp.tanh(cat @ params["W_w"].T + params["W_b"])
    v = t @ params["V_w"].T + params["V_b"]
    score = jnp.sum(v, axis=-1, keepdims=True)                  # (B, S, 1)
    score = jnp.where(mask[..., None] == 0, -jnp.inf, score)
    attn_w = jax.nn.softmax(score, axis=1)
    attn_out = attn_w * inputs

    w_ih, w_hh = params["w_ih"], params["w_hh"]
    b_ih, b_hh = params["b_ih"], params["b_hh"]

    def step(h, x_t):
        gi = x_t @ w_ih.T + b_ih
        gh = h @ w_hh.T + b_hh
        r = jax.nn.sigmoid(gi[:, :H] + gh[:, :H])
        z = jax.nn.sigmoid(gi[:, H:2 * H] + gh[:, H:2 * H])
        n = jnp.tanh(gi[:, 2 * H:] + r * gh[:, 2 * H:])
        h_new = (1.0 - z) * n + z * h
        return h_new, h_new

    h_final, outs = lax.scan(step, h0, jnp.swapaxes(attn_out, 0, 1))
    return jnp.swapaxes(outs, 0, 1), h_final[None]


if __name__ == "__main__":
    B, S, H, L = 2, 8, 32, 1   # embedding_size == hidden_size == 32

    key = jax.random.PRNGKey(0)
    ks = jax.random.split(key, 12)

    def uni(k, shape, fan_in):
        bound = 1.0 / jnp.sqrt(jnp.float32(fan_in))
        return jax.random.uniform(k, shape, jnp.float32, -bound, bound)

    params = {
        "W_w": uni(ks[0], (H, 2 * H), 2 * H),
        "W_b": uni(ks[1], (H,), 2 * H),
        "V_w": uni(ks[2], (H, H), H),
        "V_b": uni(ks[3], (H,), H),
        "w_ih": uni(ks[4], (3 * H, H), H),
        "w_hh": uni(ks[5], (3 * H, H), H),
        "b_ih": uni(ks[6], (3 * H,), H),
        "b_hh": uni(ks[7], (3 * H,), H),
    }

    inputs = jax.random.normal(ks[8], (B, S, H), jnp.float32)
    hidden_states = jax.random.normal(ks[9], (L, B, H), jnp.float32)
    # mask: batch 1 has two padded positions at the end.
    mask = jnp.ones((B, S), jnp.int32).at[1, -2:].set(0)

    prep = prepare_params(params, H)   # one-time weight preprocessing
    gru_out, gru_hid = decoder_attn_forward(inputs, hidden_states, mask, prep)
    jax.block_until_ready((gru_out, gru_hid))

    ref_out, ref_hid = _reference_forward(inputs, hidden_states, mask, params)
    assert gru_out.shape == (B, S, H) and gru_hid.shape == (L, B, H)
    assert jnp.allclose(gru_out, ref_out, atol=1e-3, rtol=1e-3)
    assert jnp.allclose(gru_hid, ref_hid, atol=1e-3, rtol=1e-3)

    print("KERNEL_OK")
</pallas_src>

<mosaic_0001>
module attributes {stable_mosaic.version = 11 : i64} {
  func.func @_decoder_attn_kernel(%arg0: i32, %arg1: memref<1x8x32xf32, #tpu.memory_space<vmem>>, %arg2: memref<1x1x32xf32, #tpu.memory_space<vmem>>, %arg3: memref<1x8x1xf32, #tpu.memory_space<vmem>>, %arg4: memref<32x32xf32, #tpu.memory_space<vmem>>, %arg5: memref<32x32xf32, #tpu.memory_space<vmem>>, %arg6: memref<1x32xf32, #tpu.memory_space<vmem>>, %arg7: memref<1x32xf32, #tpu.memory_space<vmem>>, %arg8: memref<32x96xf32, #tpu.memory_space<vmem>>, %arg9: memref<32x96xf32, #tpu.memory_space<vmem>>, %arg10: memref<1x96xf32, #tpu.memory_space<vmem>>, %arg11: memref<1x32xf32, #tpu.memory_space<vmem>>, %arg12: memref<1x1x256xf32, #tpu.memory_space<vmem>>) attributes {dimension_semantics = [#tpu.dimension_semantics<parallel>], iteration_bounds = array<i64: 2>, scalar_prefetch = 0 : i64, scratch_operands = 0 : i64, tpu.core_type = #tpu.core_type<tc>, window_params = [{transform_indices = @transform_0, window_bounds = array<i64: 1, 8, 32>}, {transform_indices = @transform_1, window_bounds = array<i64: 1, 1, 32>}, {transform_indices = @transform_2, window_bounds = array<i64: 1, 8, 1>}, {pipeline_mode = #tpu.pipeline_mode<synchronous>, transform_indices = @transform_3, window_bounds = array<i64: 32, 32>}, {pipeline_mode = #tpu.pipeline_mode<synchronous>, transform_indices = @transform_4, window_bounds = array<i64: 32, 32>}, {pipeline_mode = #tpu.pipeline_mode<synchronous>, transform_indices = @transform_5, window_bounds = array<i64: 1, 32>}, {pipeline_mode = #tpu.pipeline_mode<synchronous>, transform_indices = @transform_6, window_bounds = array<i64: 1, 32>}, {pipeline_mode = #tpu.pipeline_mode<synchronous>, transform_indices = @transform_7, window_bounds = array<i64: 32, 96>}, {pipeline_mode = #tpu.pipeline_mode<synchronous>, transform_indices = @transform_8, window_bounds = array<i64: 32, 96>}, {pipeline_mode = #tpu.pipeline_mode<synchronous>, transform_indices = @transform_9, window_bounds = array<i64: 1, 96>}, {pipeline_mode = #tpu.pipeline_mode<synchronous>, transform_indices = @transform_10, window_bounds = array<i64: 1, 32>}, {transform_indices = @transform_11, window_bounds = array<i64: 1, 1, 256>}]} {
    %c0 = arith.constant 0 : index
    %c0_0 = arith.constant 0 : index
    %c0_1 = arith.constant 0 : index
    %0 = vector.load %arg1[%c0, %c0_0, %c0_1] : memref<1x8x32xf32, #tpu.memory_space<vmem>>, vector<1x8x32xf32>
    %c0_2 = arith.constant 0 : index
    %c0_3 = arith.constant 0 : index
    %c0_4 = arith.constant 0 : index
    %1 = vector.load %arg2[%c0_2, %c0_3, %c0_4] : memref<1x1x32xf32, #tpu.memory_space<vmem>>, vector<1x1x32xf32>
    %2 = vector.shape_cast %1 : vector<1x1x32xf32> to vector<1x32xf32>
    %3 = vector.shape_cast %0 : vector<1x8x32xf32> to vector<8x32xf32>
    %c0_5 = arith.constant 0 : index
    %c0_6 = arith.constant 0 : index
    %4 = vector.load %arg4[%c0_5, %c0_6] : memref<32x32xf32, #tpu.memory_space<vmem>>, vector<32x32xf32>
    %cst = arith.constant dense<0.000000e+00> : vector<8x32xf32>
    %5 = tpu.matmul %3, %4, %cst {dimension_numbers = #tpu.dot_dimension_numbers<[1], [0], [0], [1], [0, 0, 1, 1], [], []>} : vector<8x32xf32>, vector<32x32xf32>, vector<8x32xf32> -> vector<8x32xf32>
    %c0_7 = arith.constant 0 : index
    %c0_8 = arith.constant 0 : index
    %6 = vector.load %arg5[%c0_7, %c0_8] : memref<32x32xf32, #tpu.memory_space<vmem>>, vector<32x32xf32>
    %cst_9 = arith.constant dense<0.000000e+00> : vector<1x32xf32>
    %7 = tpu.matmul %2, %6, %cst_9 {dimension_numbers = #tpu.dot_dimension_numbers<[1], [0], [0], [1], [0, 0, 1, 1], [], []>} : vector<1x32xf32>, vector<32x32xf32>, vector<1x32xf32> -> vector<1x32xf32>
    %c0_10 = arith.constant 0 : index
    %c0_11 = arith.constant 0 : index
    %8 = vector.load %arg6[%c0_10, %c0_11] : memref<1x32xf32, #tpu.memory_space<vmem>>, vector<1x32xf32>
    %9 = arith.addf %7, %8 : vector<1x32xf32>
    %10 = vector.shape_cast %5 : vector<8x32xf32> to vector<1x8x32xf32>
    %11 = vector.shape_cast %9 : vector<1x32xf32> to vector<1x1x32xf32>
    %12 = vector.broadcast %11 : vector<1x1x32xf32> to vector<1x8x32xf32>
    %13 = arith.addf %10, %12 : vector<1x8x32xf32>
    %14 = math.tanh %13 : vector<1x8x32xf32>
    %c0_12 = arith.constant 0 : index
    %c0_13 = arith.constant 0 : index
    %15 = vector.load %arg7[%c0_12, %c0_13] : memref<1x32xf32, #tpu.memory_space<vmem>>, vector<1x32xf32>
    %16 = vector.shape_cast %15 : vector<1x32xf32> to vector<1x1x32xf32>
    %17 = vector.broadcast %16 : vector<1x1x32xf32> to vector<1x8x32xf32>
    %18 = arith.mulf %14, %17 : vector<1x8x32xf32>
    %cst_14 = arith.constant dense<0.000000e+00> : vector<1x8xf32>
    %19 = vector.multi_reduction <add>, %18, %cst_14 [2] : vector<1x8x32xf32> to vector<1x8xf32>
    %20 = vector.shape_cast %19 : vector<1x8xf32> to vector<1x8x1xf32>
    %c0_15 = arith.constant 0 : index
    %c0_16 = arith.constant 0 : index
    %c0_17 = arith.constant 0 : index
    %21 = vector.load %arg3[%c0_15, %c0_16, %c0_17] : memref<1x8x1xf32, #tpu.memory_space<vmem>>, vector<1x8x1xf32>
    %22 = arith.addf %20, %21 : vector<1x8x1xf32>
    %cst_18 = arith.constant dense<0xFF800000> : vector<1x1xf32>
    %23 = vector.multi_reduction <maximumf>, %22, %cst_18 [1] : vector<1x8x1xf32> to vector<1x1xf32>
    %24 = vector.shape_cast %23 : vector<1x1xf32> to vector<1x1x1xf32>
    %25 = vector.broadcast %24 : vector<1x1x1xf32> to vector<1x8x1xf32>
    %26 = arith.subf %22, %25 : vector<1x8x1xf32>
    %27 = math.exp %26 : vector<1x8x1xf32>
    %cst_19 = arith.constant dense<0.000000e+00> : vector<1x1xf32>
    %28 = vector.multi_reduction <add>, %27, %cst_19 [1] : vector<1x8x1xf32> to vector<1x1xf32>
    %29 = vector.shape_cast %28 : vector<1x1xf32> to vector<1x1x1xf32>
    %30 = tpu.reciprocal %29 {approx = true} : vector<1x1x1xf32> -> vector<1x1x1xf32>
    %31 = vector.broadcast %30 : vector<1x1x1xf32> to vector<1x8x1xf32>
    %32 = arith.mulf %27, %31 : vector<1x8x1xf32>
    %33 = vector.broadcast %32 : vector<1x8x1xf32> to vector<1x8x32xf32>
    %34 = arith.mulf %33, %0 : vector<1x8x32xf32>
    %35 = vector.shape_cast %34 : vector<1x8x32xf32> to vector<8x32xf32>
    %c0_20 = arith.constant 0 : index
    %c0_21 = arith.constant 0 : index
    %36 = vector.load %arg8[%c0_20, %c0_21] : memref<32x96xf32, #tpu.memory_space<vmem>>, vector<32x96xf32>
    %cst_22 = arith.constant dense<0.000000e+00> : vector<8x96xf32>
    %37 = tpu.matmul %35, %36, %cst_22 {dimension_numbers = #tpu.dot_dimension_numbers<[1], [0], [0], [1], [0, 0, 1, 1], [], []>} : vector<8x32xf32>, vector<32x96xf32>, vector<8x96xf32> -> vector<8x96xf32>
    %c0_23 = arith.constant 0 : index
    %c0_24 = arith.constant 0 : index
    %38 = vector.load %arg10[%c0_23, %c0_24] : memref<1x96xf32, #tpu.memory_space<vmem>>, vector<1x96xf32>
    %39 = vector.broadcast %38 : vector<1x96xf32> to vector<8x96xf32>
    %40 = arith.addf %37, %39 : vector<8x96xf32>
    %41 = vector.shape_cast %40 : vector<8x96xf32> to vector<1x8x96xf32>
    %c0_25 = arith.constant 0 : index
    %c0_26 = arith.constant 0 : index
    %42 = vector.load %arg9[%c0_25, %c0_26] : memref<32x96xf32, #tpu.memory_space<vmem>>, vector<32x96xf32>
    %c0_27 = arith.constant 0 : index
    %c0_28 = arith.constant 0 : index
    %43 = vector.load %arg11[%c0_27, %c0_28] : memref<1x32xf32, #tpu.memory_space<vmem>>, vector<1x32xf32>
    %cst_29 = arith.constant dense<0.000000e+00> : vector<1x96xf32>
    %44 = tpu.matmul %2, %42, %cst_29 {dimension_numbers = #tpu.dot_dimension_numbers<[1], [0], [0], [1], [0, 0, 1, 1], [], []>} : vector<1x32xf32>, vector<32x96xf32>, vector<1x96xf32> -> vector<1x96xf32>
    %45 = vector.extract_strided_slice %41 {offsets = [0, 0, 0], sizes = [1, 1, 96], strides = [1, 1, 1]} : vector<1x8x96xf32> to vector<1x1x96xf32>
    %46 = vector.shape_cast %45 : vector<1x1x96xf32> to vector<1x96xf32>
    %47 = vector.extract_strided_slice %46 {offsets = [0, 0], sizes = [1, 32], strides = [1, 1]} : vector<1x96xf32> to vector<1x32xf32>
    %48 = vector.extract_strided_slice %44 {offsets = [0, 0], sizes = [1, 32], strides = [1, 1]} : vector<1x96xf32> to vector<1x32xf32>
    %49 = arith.addf %47, %48 : vector<1x32xf32>
    %50 = arith.negf %49 : vector<1x32xf32>
    %51 = math.exp %50 : vector<1x32xf32>
    %cst_30 = arith.constant 1.000000e+00 : f32
    %52 = vector.broadcast %cst_30 : f32 to vector<1x32xf32>
    %53 = arith.addf %52, %51 : vector<1x32xf32>
    %54 = arith.divf %52, %53 : vector<1x32xf32>
    %55 = vector.extract_strided_slice %46 {offsets = [0, 32], sizes = [1, 32], strides = [1, 1]} : vector<1x96xf32> to vector<1x32xf32>
    %56 = vector.extract_strided_slice %44 {offsets = [0, 32], sizes = [1, 32], strides = [1, 1]} : vector<1x96xf32> to vector<1x32xf32>
    %57 = arith.addf %55, %56 : vector<1x32xf32>
    %58 = arith.negf %57 : vector<1x32xf32>
    %59 = math.exp %58 : vector<1x32xf32>
    %cst_31 = arith.constant 1.000000e+00 : f32
    %60 = vector.broadcast %cst_31 : f32 to vector<1x32xf32>
    %61 = arith.addf %60, %59 : vector<1x32xf32>
    %62 = arith.divf %60, %61 : vector<1x32xf32>
    %63 = vector.extract_strided_slice %46 {offsets = [0, 64], sizes = [1, 32], strides = [1, 1]} : vector<1x96xf32> to vector<1x32xf32>
    %64 = vector.extract_strided_slice %44 {offsets = [0, 64], sizes = [1, 32], strides = [1, 1]} : vector<1x96xf32> to vector<1x32xf32>
    %65 = arith.addf %64, %43 : vector<1x32xf32>
    %66 = arith.mulf %54, %65 : vector<1x32xf32>
    %67 = arith.addf %63, %66 : vector<1x32xf32>
    %68 = math.tanh %67 : vector<1x32xf32>
    %cst_32 = arith.constant 1.000000e+00 : f32
    %69 = vector.broadcast %cst_32 : f32 to vector<1x32xf32>
    %70 = arith.subf %69, %62 : vector<1x32xf32>
    %71 = arith.mulf %70, %68 : vector<1x32xf32>
    %72 = arith.mulf %62, %2 : vector<1x32xf32>
    %73 = arith.addf %71, %72 : vector<1x32xf32>
    %cst_33 = arith.constant dense<0.000000e+00> : vector<1x96xf32>
    %74 = tpu.matmul %73, %42, %cst_33 {dimension_numbers = #tpu.dot_dimension_numbers<[1], [0], [0], [1], [0, 0, 1, 1], [], []>} : vector<1x32xf32>, vector<32x96xf32>, vector<1x96xf32> -> vector<1x96xf32>
    %75 = vector.extract_strided_slice %41 {offsets = [0, 1, 0], sizes = [1, 1, 96], strides = [1, 1, 1]} : vector<1x8x96xf32> to vector<1x1x96xf32>
    %76 = vector.shape_cast %75 : vector<1x1x96xf32> to vector<1x96xf32>
    %77 = vector.extract_strided_slice %76 {offsets = [0, 0], sizes = [1, 32], strides = [1, 1]} : vector<1x96xf32> to vector<1x32xf32>
    %78 = vector.extract_strided_slice %74 {offsets = [0, 0], sizes = [1, 32], strides = [1, 1]} : vector<1x96xf32> to vector<1x32xf32>
    %79 = arith.addf %77, %78 : vector<1x32xf32>
    %80 = arith.negf %79 : vector<1x32xf32>
    %81 = math.exp %80 : vector<1x32xf32>
    %cst_34 = arith.constant 1.000000e+00 : f32
    %82 = vector.broadcast %cst_34 : f32 to vector<1x32xf32>
    %83 = arith.addf %82, %81 : vector<1x32xf32>
    %84 = arith.divf %82, %83 : vector<1x32xf32>
    %85 = vector.extract_strided_slice %76 {offsets = [0, 32], sizes = [1, 32], strides = [1, 1]} : vector<1x96xf32> to vector<1x32xf32>
    %86 = vector.extract_strided_slice %74 {offsets = [0, 32], sizes = [1, 32], strides = [1, 1]} : vector<1x96xf32> to vector<1x32xf32>
    %87 = arith.addf %85, %86 : vector<1x32xf32>
    %88 = arith.negf %87 : vector<1x32xf32>
    %89 = math.exp %88 : vector<1x32xf32>
    %cst_35 = arith.constant 1.000000e+00 : f32
    %90 = vector.broadcast %cst_35 : f32 to vector<1x32xf32>
    %91 = arith.addf %90, %89 : vector<1x32xf32>
    %92 = arith.divf %90, %91 : vector<1x32xf32>
    %93 = vector.extract_strided_slice %76 {offsets = [0, 64], sizes = [1, 32], strides = [1, 1]} : vector<1x96xf32> to vector<1x32xf32>
    %94 = vector.extract_strided_slice %74 {offsets = [0, 64], sizes = [1, 32], strides = [1, 1]} : vector<1x96xf32> to vector<1x32xf32>
    %95 = arith.addf %94, %43 : vector<1x32xf32>
    %96 = arith.mulf %84, %95 : vector<1x32xf32>
    %97 = arith.addf %93, %96 : vector<1x32xf32>
    %98 = math.tanh %97 : vector<1x32xf32>
    %cst_36 = arith.constant 1.000000e+00 : f32
    %99 = vector.broadcast %cst_36 : f32 to vector<1x32xf32>
    %100 = arith.subf %99, %92 : vector<1x32xf32>
    %101 = arith.mulf %100, %98 : vector<1x32xf32>
    %102 = arith.mulf %92, %73 : vector<1x32xf32>
    %103 = arith.addf %101, %102 : vector<1x32xf32>
    %cst_37 = arith.constant dense<0.000000e+00> : vector<1x96xf32>
    %104 = tpu.matmul %103, %42, %cst_37 {dimension_numbers = #tpu.dot_dimension_numbers<[1], [0], [0], [1], [0, 0, 1, 1], [], []>} : vector<1x32xf32>, vector<32x96xf32>, vector<1x96xf32> -> vector<1x96xf32>
    %105 = vector.extract_strided_slice %41 {offsets = [0, 2, 0], sizes = [1, 1, 96], strides = [1, 1, 1]} : vector<1x8x96xf32> to vector<1x1x96xf32>
    %106 = vector.shape_cast %105 : vector<1x1x96xf32> to vector<1x96xf32>
    %107 = vector.extract_strided_slice %106 {offsets = [0, 0], sizes = [1, 32], strides = [1, 1]} : vector<1x96xf32> to vector<1x32xf32>
    %108 = vector.extract_strided_slice %104 {offsets = [0, 0], sizes = [1, 32], strides = [1, 1]} : vector<1x96xf32> to vector<1x32xf32>
    %109 = arith.addf %107, %108 : vector<1x32xf32>
    %110 = arith.negf %109 : vector<1x32xf32>
    %111 = math.exp %110 : vector<1x32xf32>
    %cst_38 = arith.constant 1.000000e+00 : f32
    %112 = vector.broadcast %cst_38 : f32 to vector<1x32xf32>
    %113 = arith.addf %112, %111 : vector<1x32xf32>
    %114 = arith.divf %112, %113 : vector<1x32xf32>
    %115 = vector.extract_strided_slice %106 {offsets = [0, 32], sizes = [1, 32], strides = [1, 1]} : vector<1x96xf32> to vector<1x32xf32>
    %116 = vector.extract_strided_slice %104 {offsets = [0, 32], sizes = [1, 32], strides = [1, 1]} : vector<1x96xf32> to vector<1x32xf32>
    %117 = arith.addf %115, %116 : vector<1x32xf32>
    %118 = arith.negf %117 : vector<1x32xf32>
    %119 = math.exp %118 : vector<1x32xf32>
    %cst_39 = arith.constant 1.000000e+00 : f32
    %120 = vector.broadcast %cst_39 : f32 to vector<1x32xf32>
    %121 = arith.addf %120, %119 : vector<1x32xf32>
    %122 = arith.divf %120, %121 : vector<1x32xf32>
    %123 = vector.extract_strided_slice %106 {offsets = [0, 64], sizes = [1, 32], strides = [1, 1]} : vector<1x96xf32> to vector<1x32xf32>
    %124 = vector.extract_strided_slice %104 {offsets = [0, 64], sizes = [1, 32], strides = [1, 1]} : vector<1x96xf32> to vector<1x32xf32>
    %125 = arith.addf %124, %43 : vector<1x32xf32>
    %126 = arith.mulf %114, %125 : vector<1x32xf32>
    %127 = arith.addf %123, %126 : vector<1x32xf32>
    %128 = math.tanh %127 : vector<1x32xf32>
    %cst_40 = arith.constant 1.000000e+00 : f32
    %129 = vector.broadcast %cst_40 : f32 to vector<1x32xf32>
    %130 = arith.subf %129, %122 : vector<1x32xf32>
    %131 = arith.mulf %130, %128 : vector<1x32xf32>
    %132 = arith.mulf %122, %103 : vector<1x32xf32>
    %133 = arith.addf %131, %132 : vector<1x32xf32>
    %cst_41 = arith.constant dense<0.000000e+00> : vector<1x96xf32>
    %134 = tpu.matmul %133, %42, %cst_41 {dimension_numbers = #tpu.dot_dimension_numbers<[1], [0], [0], [1], [0, 0, 1, 1], [], []>} : vector<1x32xf32>, vector<32x96xf32>, vector<1x96xf32> -> vector<1x96xf32>
    %135 = vector.extract_strided_slice %41 {offsets = [0, 3, 0], sizes = [1, 1, 96], strides = [1, 1, 1]} : vector<1x8x96xf32> to vector<1x1x96xf32>
    %136 = vector.shape_cast %135 : vector<1x1x96xf32> to vector<1x96xf32>
    %137 = vector.extract_strided_slice %136 {offsets = [0, 0], sizes = [1, 32], strides = [1, 1]} : vector<1x96xf32> to vector<1x32xf32>
    %138 = vector.extract_strided_slice %134 {offsets = [0, 0], sizes = [1, 32], strides = [1, 1]} : vector<1x96xf32> to vector<1x32xf32>
    %139 = arith.addf %137, %138 : vector<1x32xf32>
    %140 = arith.negf %139 : vector<1x32xf32>
    %141 = math.exp %140 : vector<1x32xf32>
    %cst_42 = arith.constant 1.000000e+00 : f32
    %142 = vector.broadcast %cst_42 : f32 to vector<1x32xf32>
    %143 = arith.addf %142, %141 : vector<1x32xf32>
    %144 = arith.divf %142, %143 : vector<1x32xf32>
    %145 = vector.extract_strided_slice %136 {offsets = [0, 32], sizes = [1, 32], strides = [1, 1]} : vector<1x96xf32> to vector<1x32xf32>
    %146 = vector.extract_strided_slice %134 {offsets = [0, 32], sizes = [1, 32], strides = [1, 1]} : vector<1x96xf32> to vector<1x32xf32>
    %147 = arith.addf %145, %146 : vector<1x32xf32>
    %148 = arith.negf %147 : vector<1x32xf32>
    %149 = math.exp %148 : vector<1x32xf32>
    %cst_43 = arith.constant 1.000000e+00 : f32
    %150 = vector.broadcast %cst_43 : f32 to vector<1x32xf32>
    %151 = arith.addf %150, %149 : vector<1x32xf32>
    %152 = arith.divf %150, %151 : vector<1x32xf32>
    %153 = vector.extract_strided_slice %136 {offsets = [0, 64], sizes = [1, 32], strides = [1, 1]} : vector<1x96xf32> to vector<1x32xf32>
    %154 = vector.extract_strided_slice %134 {offsets = [0, 64], sizes = [1, 32], strides = [1, 1]} : vector<1x96xf32> to vector<1x32xf32>
    %155 = arith.addf %154, %43 : vector<1x32xf32>
    %156 = arith.mulf %144, %155 : vector<1x32xf32>
    %157 = arith.addf %153, %156 : vector<1x32xf32>
    %158 = math.tanh %157 : vector<1x32xf32>
    %cst_44 = arith.constant 1.000000e+00 : f32
    %159 = vector.broadcast %cst_44 : f32 to vector<1x32xf32>
    %160 = arith.subf %159, %152 : vector<1x32xf32>
    %161 = arith.mulf %160, %158 : vector<1x32xf32>
    %162 = arith.mulf %152, %133 : vector<1x32xf32>
    %163 = arith.addf %161, %162 : vector<1x32xf32>
    %cst_45 = arith.constant dense<0.000000e+00> : vector<1x96xf32>
    %164 = tpu.matmul %163, %42, %cst_45 {dimension_numbers = #tpu.dot_dimension_numbers<[1], [0], [0], [1], [0, 0, 1, 1], [], []>} : vector<1x32xf32>, vector<32x96xf32>, vector<1x96xf32> -> vector<1x96xf32>
    %165 = vector.extract_strided_slice %41 {offsets = [0, 4, 0], sizes = [1, 1, 96], strides = [1, 1, 1]} : vector<1x8x96xf32> to vector<1x1x96xf32>
    %166 = vector.shape_cast %165 : vector<1x1x96xf32> to vector<1x96xf32>
    %167 = vector.extract_strided_slice %166 {offsets = [0, 0], sizes = [1, 32], strides = [1, 1]} : vector<1x96xf32> to vector<1x32xf32>
    %168 = vector.extract_strided_slice %164 {offsets = [0, 0], sizes = [1, 32], strides = [1, 1]} : vector<1x96xf32> to vector<1x32xf32>
    %169 = arith.addf %167, %168 : vector<1x32xf32>
    %170 = arith.negf %169 : vector<1x32xf32>
    %171 = math.exp %170 : vector<1x32xf32>
    %cst_46 = arith.constant 1.000000e+00 : f32
    %172 = vector.broadcast %cst_46 : f32 to vector<1x32xf32>
    %173 = arith.addf %172, %171 : vector<1x32xf32>
    %174 = arith.divf %172, %173 : vector<1x32xf32>
    %175 = vector.extract_strided_slice %166 {offsets = [0, 32], sizes = [1, 32], strides = [1, 1]} : vector<1x96xf32> to vector<1x32xf32>
    %176 = vector.extract_strided_slice %164 {offsets = [0, 32], sizes = [1, 32], strides = [1, 1]} : vector<1x96xf32> to vector<1x32xf32>
    %177 = arith.addf %175, %176 : vector<1x32xf32>
    %178 = arith.negf %177 : vector<1x32xf32>
    %179 = math.exp %178 : vector<1x32xf32>
    %cst_47 = arith.constant 1.000000e+00 : f32
    %180 = vector.broadcast %cst_47 : f32 to vector<1x32xf32>
    %181 = arith.addf %180, %179 : vector<1x32xf32>
    %182 = arith.divf %180, %181 : vector<1x32xf32>
    %183 = vector.extract_strided_slice %166 {offsets = [0, 64], sizes = [1, 32], strides = [1, 1]} : vector<1x96xf32> to vector<1x32xf32>
    %184 = vector.extract_strided_slice %164 {offsets = [0, 64], sizes = [1, 32], strides = [1, 1]} : vector<1x96xf32> to vector<1x32xf32>
    %185 = arith.addf %184, %43 : vector<1x32xf32>
    %186 = arith.mulf %174, %185 : vector<1x32xf32>
    %187 = arith.addf %183, %186 : vector<1x32xf32>
    %188 = math.tanh %187 : vector<1x32xf32>
    %cst_48 = arith.constant 1.000000e+00 : f32
    %189 = vector.broadcast %cst_48 : f32 to vector<1x32xf32>
    %190 = arith.subf %189, %182 : vector<1x32xf32>
    %191 = arith.mulf %190, %188 : vector<1x32xf32>
    %192 = arith.mulf %182, %163 : vector<1x32xf32>
    %193 = arith.addf %191, %192 : vector<1x32xf32>
    %cst_49 = arith.constant dense<0.000000e+00> : vector<1x96xf32>
    %194 = tpu.matmul %193, %42, %cst_49 {dimension_numbers = #tpu.dot_dimension_numbers<[1], [0], [0], [1], [0, 0, 1, 1], [], []>} : vector<1x32xf32>, vector<32x96xf32>, vector<1x96xf32> -> vector<1x96xf32>
    %195 = vector.extract_strided_slice %41 {offsets = [0, 5, 0], sizes = [1, 1, 96], strides = [1, 1, 1]} : vector<1x8x96xf32> to vector<1x1x96xf32>
    %196 = vector.shape_cast %195 : vector<1x1x96xf32> to vector<1x96xf32>
    %197 = vector.extract_strided_slice %196 {offsets = [0, 0], sizes = [1, 32], strides = [1, 1]} : vector<1x96xf32> to vector<1x32xf32>
    %198 = vector.extract_strided_slice %194 {offsets = [0, 0], sizes = [1, 32], strides = [1, 1]} : vector<1x96xf32> to vector<1x32xf32>
    %199 = arith.addf %197, %198 : vector<1x32xf32>
    %200 = arith.negf %199 : vector<1x32xf32>
    %201 = math.exp %200 : vector<1x32xf32>
    %cst_50 = arith.constant 1.000000e+00 : f32
    %202 = vector.broadcast %cst_50 : f32 to vector<1x32xf32>
    %203 = arith.addf %202, %201 : vector<1x32xf32>
    %204 = arith.divf %202, %203 : vector<1x32xf32>
    %205 = vector.extract_strided_slice %196 {offsets = [0, 32], sizes = [1, 32], strides = [1, 1]} : vector<1x96xf32> to vector<1x32xf32>
    %206 = vector.extract_strided_slice %194 {offsets = [0, 32], sizes = [1, 32], strides = [1, 1]} : vector<1x96xf32> to vector<1x32xf32>
    %207 = arith.addf %205, %206 : vector<1x32xf32>
    %208 = arith.negf %207 : vector<1x32xf32>
    %209 = math.exp %208 : vector<1x32xf32>
    %cst_51 = arith.constant 1.000000e+00 : f32
    %210 = vector.broadcast %cst_51 : f32 to vector<1x32xf32>
    %211 = arith.addf %210, %209 : vector<1x32xf32>
    %212 = arith.divf %210, %211 : vector<1x32xf32>
    %213 = vector.extract_strided_slice %196 {offsets = [0, 64], sizes = [1, 32], strides = [1, 1]} : vector<1x96xf32> to vector<1x32xf32>
    %214 = vector.extract_strided_slice %194 {offsets = [0, 64], sizes = [1, 32], strides = [1, 1]} : vector<1x96xf32> to vector<1x32xf32>
    %215 = arith.addf %214, %43 : vector<1x32xf32>
    %216 = arith.mulf %204, %215 : vector<1x32xf32>
    %217 = arith.addf %213, %216 : vector<1x32xf32>
    %218 = math.tanh %217 : vector<1x32xf32>
    %cst_52 = arith.constant 1.000000e+00 : f32
    %219 = vector.broadcast %cst_52 : f32 to vector<1x32xf32>
    %220 = arith.subf %219, %212 : vector<1x32xf32>
    %221 = arith.mulf %220, %218 : vector<1x32xf32>
    %222 = arith.mulf %212, %193 : vector<1x32xf32>
    %223 = arith.addf %221, %222 : vector<1x32xf32>
    %cst_53 = arith.constant dense<0.000000e+00> : vector<1x96xf32>
    %224 = tpu.matmul %223, %42, %cst_53 {dimension_numbers = #tpu.dot_dimension_numbers<[1], [0], [0], [1], [0, 0, 1, 1], [], []>} : vector<1x32xf32>, vector<32x96xf32>, vector<1x96xf32> -> vector<1x96xf32>
    %225 = vector.extract_strided_slice %41 {offsets = [0, 6, 0], sizes = [1, 1, 96], strides = [1, 1, 1]} : vector<1x8x96xf32> to vector<1x1x96xf32>
    %226 = vector.shape_cast %225 : vector<1x1x96xf32> to vector<1x96xf32>
    %227 = vector.extract_strided_slice %226 {offsets = [0, 0], sizes = [1, 32], strides = [1, 1]} : vector<1x96xf32> to vector<1x32xf32>
    %228 = vector.extract_strided_slice %224 {offsets = [0, 0], sizes = [1, 32], strides = [1, 1]} : vector<1x96xf32> to vector<1x32xf32>
    %229 = arith.addf %227, %228 : vector<1x32xf32>
    %230 = arith.negf %229 : vector<1x32xf32>
    %231 = math.exp %230 : vector<1x32xf32>
    %cst_54 = arith.constant 1.000000e+00 : f32
    %232 = vector.broadcast %cst_54 : f32 to vector<1x32xf32>
    %233 = arith.addf %232, %231 : vector<1x32xf32>
    %234 = arith.divf %232, %233 : vector<1x32xf32>
    %235 = vector.extract_strided_slice %226 {offsets = [0, 32], sizes = [1, 32], strides = [1, 1]} : vector<1x96xf32> to vector<1x32xf32>
    %236 = vector.extract_strided_slice %224 {offsets = [0, 32], sizes = [1, 32], strides = [1, 1]} : vector<1x96xf32> to vector<1x32xf32>
    %237 = arith.addf %235, %236 : vector<1x32xf32>
    %238 = arith.negf %237 : vector<1x32xf32>
    %239 = math.exp %238 : vector<1x32xf32>
    %cst_55 = arith.constant 1.000000e+00 : f32
    %240 = vector.broadcast %cst_55 : f32 to vector<1x32xf32>
    %241 = arith.addf %240, %239 : vector<1x32xf32>
    %242 = arith.divf %240, %241 : vector<1x32xf32>
    %243 = vector.extract_strided_slice %226 {offsets = [0, 64], sizes = [1, 32], strides = [1, 1]} : vector<1x96xf32> to vector<1x32xf32>
    %244 = vector.extract_strided_slice %224 {offsets = [0, 64], sizes = [1, 32], strides = [1, 1]} : vector<1x96xf32> to vector<1x32xf32>
    %245 = arith.addf %244, %43 : vector<1x32xf32>
    %246 = arith.mulf %234, %245 : vector<1x32xf32>
    %247 = arith.addf %243, %246 : vector<1x32xf32>
    %248 = math.tanh %247 : vector<1x32xf32>
    %cst_56 = arith.constant 1.000000e+00 : f32
    %249 = vector.broadcast %cst_56 : f32 to vector<1x32xf32>
    %250 = arith.subf %249, %242 : vector<1x32xf32>
    %251 = arith.mulf %250, %248 : vector<1x32xf32>
    %252 = arith.mulf %242, %223 : vector<1x32xf32>
    %253 = arith.addf %251, %252 : vector<1x32xf32>
    %cst_57 = arith.constant dense<0.000000e+00> : vector<1x96xf32>
    %254 = tpu.matmul %253, %42, %cst_57 {dimension_numbers = #tpu.dot_dimension_numbers<[1], [0], [0], [1], [0, 0, 1, 1], [], []>} : vector<1x32xf32>, vector<32x96xf32>, vector<1x96xf32> -> vector<1x96xf32>
    %255 = vector.extract_strided_slice %41 {offsets = [0, 7, 0], sizes = [1, 1, 96], strides = [1, 1, 1]} : vector<1x8x96xf32> to vector<1x1x96xf32>
    %256 = vector.shape_cast %255 : vector<1x1x96xf32> to vector<1x96xf32>
    %257 = vector.extract_strided_slice %256 {offsets = [0, 0], sizes = [1, 32], strides = [1, 1]} : vector<1x96xf32> to vector<1x32xf32>
    %258 = vector.extract_strided_slice %254 {offsets = [0, 0], sizes = [1, 32], strides = [1, 1]} : vector<1x96xf32> to vector<1x32xf32>
    %259 = arith.addf %257, %258 : vector<1x32xf32>
    %260 = arith.negf %259 : vector<1x32xf32>
    %261 = math.exp %260 : vector<1x32xf32>
    %cst_58 = arith.constant 1.000000e+00 : f32
    %262 = vector.broadcast %cst_58 : f32 to vector<1x32xf32>
    %263 = arith.addf %262, %261 : vector<1x32xf32>
    %264 = arith.divf %262, %263 : vector<1x32xf32>
    %265 = vector.extract_strided_slice %256 {offsets = [0, 32], sizes = [1, 32], strides = [1, 1]} : vector<1x96xf32> to vector<1x32xf32>
    %266 = vector.extract_strided_slice %254 {offsets = [0, 32], sizes = [1, 32], strides = [1, 1]} : vector<1x96xf32> to vector<1x32xf32>
    %267 = arith.addf %265, %266 : vector<1x32xf32>
    %268 = arith.negf %267 : vector<1x32xf32>
    %269 = math.exp %268 : vector<1x32xf32>
    %cst_59 = arith.constant 1.000000e+00 : f32
    %270 = vector.broadcast %cst_59 : f32 to vector<1x32xf32>
    %271 = arith.addf %270, %269 : vector<1x32xf32>
    %272 = arith.divf %270, %271 : vector<1x32xf32>
    %273 = vector.extract_strided_slice %256 {offsets = [0, 64], sizes = [1, 32], strides = [1, 1]} : vector<1x96xf32> to vector<1x32xf32>
    %274 = vector.extract_strided_slice %254 {offsets = [0, 64], sizes = [1, 32], strides = [1, 1]} : vector<1x96xf32> to vector<1x32xf32>
    %275 = arith.addf %274, %43 : vector<1x32xf32>
    %276 = arith.mulf %264, %275 : vector<1x32xf32>
    %277 = arith.addf %273, %276 : vector<1x32xf32>
    %278 = math.tanh %277 : vector<1x32xf32>
    %cst_60 = arith.constant 1.000000e+00 : f32
    %279 = vector.broadcast %cst_60 : f32 to vector<1x32xf32>
    %280 = arith.subf %279, %272 : vector<1x32xf32>
    %281 = arith.mulf %280, %278 : vector<1x32xf32>
    %282 = arith.mulf %272, %253 : vector<1x32xf32>
    %283 = arith.addf %281, %282 : vector<1x32xf32>
    %284 = tpu.concatenate %73, %103, %133, %163, %193, %223, %253, %283 in 1 : vector<1x32xf32>, vector<1x32xf32>, vector<1x32xf32>, vector<1x32xf32>, vector<1x32xf32>, vector<1x32xf32>, vector<1x32xf32>, vector<1x32xf32> -> vector<1x256xf32>
    %285 = vector.shape_cast %284 : vector<1x256xf32> to vector<1x1x256xf32>
    %c0_61 = arith.constant 0 : index
    %c0_62 = arith.constant 0 : index
    %c0_63 = arith.constant 0 : index
    %286 = vector.load %arg12[%c0_61, %c0_62, %c0_63] : memref<1x1x256xf32, #tpu.memory_space<vmem>>, vector<1x1x256xf32>
    tpu.vector_store %arg12[%c0_61, %c0_62, %c0_63], %285 {strides = array<i32>} : memref<1x1x256xf32, #tpu.memory_space<vmem>>, vector<1x1x256xf32>,
    return
  }
  func.func @transform_0(%arg0: i32) -> (i32, i32, i32) {
    %c0_i32 = arith.constant 0 : i32
    %c0_i32_0 = arith.constant 0 : i32
    %c0_i32_1 = arith.constant 0 : i32
    return %arg0, %c0_i32, %c0_i32_0 : i32, i32, i32
  }
  func.func @transform_1(%arg0: i32) -> (i32, i32, i32) {
    %c0_i32 = arith.constant 0 : i32
    %c0_i32_0 = arith.constant 0 : i32
    %c0_i32_1 = arith.constant 0 : i32
    return %arg0, %c0_i32, %c0_i32_0 : i32, i32, i32
  }
  func.func @transform_2(%arg0: i32) -> (i32, i32, i32) {
    %c0_i32 = arith.constant 0 : i32
    %c0_i32_0 = arith.constant 0 : i32
    %c0_i32_1 = arith.constant 0 : i32
    return %arg0, %c0_i32, %c0_i32_0 : i32, i32, i32
  }
  func.func @transform_3(%arg0: i32) -> (i32, i32) {
    %c0_i32 = arith.constant 0 : i32
    %c0_i32_0 = arith.constant 0 : i32
    %c0_i32_1 = arith.constant 0 : i32
    return %c0_i32, %c0_i32_0 : i32, i32
  }
  func.func @transform_4(%arg0: i32) -> (i32, i32) {
    %c0_i32 = arith.constant 0 : i32
    %c0_i32_0 = arith.constant 0 : i32
    %c0_i32_1 = arith.constant 0 : i32
    return %c0_i32, %c0_i32_0 : i32, i32
  }
  func.func @transform_5(%arg0: i32) -> (i32, i32) {
    %c0_i32 = arith.constant 0 : i32
    %c0_i32_0 = arith.constant 0 : i32
    %c0_i32_1 = arith.constant 0 : i32
    return %c0_i32, %c0_i32_0 : i32, i32
  }
  func.func @transform_6(%arg0: i32) -> (i32, i32) {
    %c0_i32 = arith.constant 0 : i32
    %c0_i32_0 = arith.constant 0 : i32
    %c0_i32_1 = arith.constant 0 : i32
    return %c0_i32, %c0_i32_0 : i32, i32
  }
  func.func @transform_7(%arg0: i32) -> (i32, i32) {
    %c0_i32 = arith.constant 0 : i32
    %c0_i32_0 = arith.constant 0 : i32
    %c0_i32_1 = arith.constant 0 : i32
    return %c0_i32, %c0_i32_0 : i32, i32
  }
  func.func @transform_8(%arg0: i32) -> (i32, i32) {
    %c0_i32 = arith.constant 0 : i32
    %c0_i32_0 = arith.constant 0 : i32
    %c0_i32_1 = arith.constant 0 : i32
    return %c0_i32, %c0_i32_0 : i32, i32
  }
  func.func @transform_9(%arg0: i32) -> (i32, i32) {
    %c0_i32 = arith.constant 0 : i32
    %c0_i32_0 = arith.constant 0 : i32
    %c0_i32_1 = arith.constant 0 : i32
    return %c0_i32, %c0_i32_0 : i32, i32
  }
  func.func @transform_10(%arg0: i32) -> (i32, i32) {
    %c0_i32 = arith.constant 0 : i32
    %c0_i32_0 = arith.constant 0 : i32
    %c0_i32_1 = arith.constant 0 : i32
    return %c0_i32, %c0_i32_0 : i32, i32
  }
  func.func @transform_11(%arg0: i32) -> (i32, i32, i32) {
    %c0_i32 = arith.constant 0 : i32
    %c0_i32_0 = arith.constant 0 : i32
    %c0_i32_1 = arith.constant 0 : i32
    return %arg0, %c0_i32, %c0_i32_0 : i32, i32, i32
  }
}

</mosaic_0001>

<llo_original>
// kernel: decoder_attn_forward.1
$region0: #{decoder_attn_forward.1}
  #allocation0 [shape = 'u32[]', space=smem, size = 0x4, offset = 0x4, fixed_abs, tag = 'smem constant byte address 0x4 - core index']
  #allocation1 [shape = 'u32[72,128]{1,0:T(1,128)}', space=vmem, size = 0x9000, scoped, tag = 'internal scratch']
  %s0 = inlined_call_operand.vmem [shape: f32[2,8,32], index: 0, kind: input, shape index: {}]
  %s1 = inlined_call_operand.vmem [shape: f32[2,1,32], index: 1, kind: input, shape index: {}]
  %s2 = inlined_call_operand.vmem [shape: f32[2,8,1], index: 2, kind: input, shape index: {}]
  %s3 = inlined_call_operand.hbm [shape: f32[32,32], index: 3, kind: input, shape index: {}]
  %s4 = inlined_call_operand.hbm [shape: f32[32,32], index: 4, kind: input, shape index: {}]
  %s5 = inlined_call_operand.vmem [shape: f32[1,32], index: 5, kind: input, shape index: {}]
  %s6 = inlined_call_operand.vmem [shape: f32[1,32], index: 6, kind: input, shape index: {}]
  %s7 = inlined_call_operand.hbm [shape: f32[32,96], index: 7, kind: input, shape index: {}]
  %s8 = inlined_call_operand.hbm [shape: f32[32,96], index: 8, kind: input, shape index: {}]
  %s9 = inlined_call_operand.vmem [shape: f32[1,96], index: 9, kind: input, shape index: {}]
  %s10 = inlined_call_operand.vmem [shape: f32[1,32], index: 10, kind: input, shape index: {}]
  %s11 = inlined_call_operand.vmem [shape: f32[2,1,256], index: 11, kind: output, shape index: {}]
  %s12 = sld [smem:[#allocation0]]
  $region93: #{decoder_attn_forward.1} parent=0
    _
  %s14 = ssub.s32 1, %s12
  %s15 = scalar_select 0, %s14, %s12
  $region1: #{decoder_attn_forward.1} parent=0
    #allocation2 [shape = 'u8[16384]{0}', space=vmem, size = 0x4000, scoped, tag = 'input window, operand 3, single buffered']
    #allocation3 [shape = 's32[2]{0}', space=sflag, size = 0x8, scoped, tag = 'scoped memory for decoder_attn_forward.1']
    #allocation4 [shape = 'u8[16384]{0}', space=vmem, size = 0x4000, scoped, tag = 'input window, operand 4, single buffered']
    #allocation5 [shape = 's32[1]{0}', space=sflag, size = 0x4, scoped, tag = 'scoped memory for decoder_attn_forward.1']
    #allocation6 [shape = 'u8[16384]{0}', space=vmem, size = 0x4000, scoped, tag = 'input window, operand 7, single buffered']
    #allocation7 [shape = 'u8[16384]{0}', space=vmem, size = 0x4000, scoped, tag = 'input window, operand 8, single buffered']
    #allocation8 [shape = 's32[1]{0}', space=sflag, size = 0x4, scoped, tag = 'scoped memory for decoder_attn_forward.1']
    %16 = vsyncpa [#allocation3], 0
    %17 = vsyncpa [#allocation5], 0
    %18 = vsyncpa [#allocation8], 0
    loop: start=0, step=1, limit=4
    $region2: #{decoder_attn_forward.1} parent=1 // loop_pre_header
      _
    $region3: #{decoder_attn_forward.1} parent=1 // loop_header
      %s20 = sphi 0, %s24
      %p21 = scmp.ge.s32.totalorder %s20, 4
      %s30 = sphi 0, %s32
      %s33 = sphi 0, %s30
      %s34 = sphi 0, %s33
      %s50 = sphi 0, %s34
      %s56 = sphi 0, %s58
      %s59 = sphi 0, %s56
      %s60 = sphi 0, %s59
      %s76 = sphi 0, %s60
      %s82 = sphi 0, %s84
      %s85 = sphi 0, %s82
      %s86 = sphi 0, %s85
      %s102 = sphi 0, %s86
      %s106 = sphi 0, %s106
      %s108 = sphi 0, %s106
      %s109 = sphi 0, %s108
      %s123 = sphi 0, %s109
      %s127 = sphi 0, %s127
      %s129 = sphi 0, %s127
      %s130 = sphi 0, %s129
      %s144 = sphi 0, %s130
      %s148 = sphi 0, %s148
      %s150 = sphi 0, %s148
      %s151 = sphi 0, %s150
      %s165 = sphi 0, %s151
      %s169 = sphi 0, %s169
      %s171 = sphi 0, %s169
      %s172 = sphi 0, %s171
      %s186 = sphi 0, %s172
      %s190 = sphi 0, %s190
      %s192 = sphi 0, %s190
      %s193 = sphi 0, %s192
      %s207 = sphi 0, %s193
      %s211 = sphi 0, %s211
      %s213 = sphi 0, %s211
      %s214 = sphi 0, %s213
      %s228 = sphi 0, %s214
      %s232 = sphi 0, %s232
      %s234 = sphi 0, %s232
      %s235 = sphi 0, %s234
      %s249 = sphi 0, %s235
      %s253 = sphi 0, %s253
      %s255 = sphi 0, %s253
      %s256 = sphi 0, %s255
      %s270 = sphi 0, %s256
      %s276 = sphi 0, %s278
      %s279 = sphi 0, %s276
      %s280 = sphi 0, %s279
      %s296 = sphi 0, %s280
    $region4: #{decoder_attn_forward.1} parent=1 // loop_header_branch
      %23 = sbr.rel (%p21) target = $region8
    $region5: #{decoder_attn_forward.1} parent=1 // loop_body
      %s25 = ssub.s32 %s20, 1
      %s26 = ssub.s32 %s20, 2
      %s27 = sadd.s32 %s20, 1
      %s28 = ssub.s32 %s20, %s27
      %p29 = scmp.eq.s32.totalorder %s28, 0
      %s31 = sadd.s32 %s30, 1
      %s32 = scalar_select %p29, %s30, %s31
      %p35 = pneg %p29
      %p36 = scmp.eq.s32.totalorder %s20, 1
      %p37 = por %p35, %p36
      %p38 = scmp.ne.s32.totalorder %s30, %s33
      %p39 = scmp.eq.s32.totalorder %s20, 0
      %p40 = por %p38, %p39
      %p41 = scmp.ne.s32.totalorder %s30, %s33
      %p42 = scmp.eq.s32.totalorder %s25, 1
      %p43 = por %p41, %p42
      %p44 = scmp.ne.s32.totalorder %s33, %s34
      %p45 = scmp.eq.s32.totalorder %s25, 0
      %p46 = por %p44, %p45
      %p47 = scmp.ne.s32.totalorder %s33, %s34
      %p48 = scmp.eq.s32.totalorder %s26, 1
      %p49 = por %p47, %p48
      %p51 = scmp.ne.s32.totalorder %s34, %s50
      %p52 = scmp.eq.s32.totalorder %s26, 0
      %p53 = por %p51, %p52
      %s54 = ssub.s32 %s20, %s27
      %p55 = scmp.eq.s32.totalorder %s54, 0
      %s57 = sadd.s32 %s56, 1
      %s58 = scalar_select %p55, %s56, %s57
      %p61 = pneg %p55
      %p62 = scmp.eq.s32.totalorder %s20, 1
      %p63 = por %p61, %p62
      %p64 = scmp.ne.s32.totalorder %s56, %s59
      %p65 = scmp.eq.s32.totalorder %s20, 0
      %p66 = por %p64, %p65
      %p67 = scmp.ne.s32.totalorder %s56, %s59
      %p68 = scmp.eq.s32.totalorder %s25, 1
      %p69 = por %p67, %p68
      %p70 = scmp.ne.s32.totalorder %s59, %s60
      %p71 = scmp.eq.s32.totalorder %s25, 0
      %p72 = por %p70, %p71
      %p73 = scmp.ne.s32.totalorder %s59, %s60
      %p74 = scmp.eq.s32.totalorder %s26, 1
      %p75 = por %p73, %p74
      %p77 = scmp.ne.s32.totalorder %s60, %s76
      %p78 = scmp.eq.s32.totalorder %s26, 0
      %p79 = por %p77, %p78
      %s80 = ssub.s32 %s20, %s27
      %p81 = scmp.eq.s32.totalorder %s80, 0
      %s83 = sadd.s32 %s82, 1
      %s84 = scalar_select %p81, %s82, %s83
      %p87 = pneg %p81
      %p88 = scmp.eq.s32.totalorder %s20, 1
      %p89 = por %p87, %p88
      %p90 = scmp.ne.s32.totalorder %s82, %s85
      %p91 = scmp.eq.s32.totalorder %s20, 0
      %p92 = por %p90, %p91
      %p93 = scmp.ne.s32.totalorder %s82, %s85
      %p94 = scmp.eq.s32.totalorder %s25, 1
      %p95 = por %p93, %p94
      %p96 = scmp.ne.s32.totalorder %s85, %s86
      %p97 = scmp.eq.s32.totalorder %s25, 0
      %p98 = por %p96, %p97
      %p99 = scmp.ne.s32.totalorder %s85, %s86
      %p100 = scmp.eq.s32.totalorder %s26, 1
      %p101 = por %p99, %p100
      %p103 = scmp.ne.s32.totalorder %s86, %s102
      %p104 = scmp.eq.s32.totalorder %s26, 0
      %p105 = por %p103, %p104
      %s107 = sadd.s32 %s106, 1
      %p110 = scmp.eq.s32.totalorder %s20, 1
      %p111 = scmp.ne.s32.totalorder %s106, %s108
      %p112 = scmp.eq.s32.totalorder %s20, 0
      %p113 = por %p111, %p112
      %p114 = scmp.ne.s32.totalorder %s106, %s108
      %p115 = scmp.eq.s32.totalorder %s25, 1
      %p116 = por %p114, %p115
      %p117 = scmp.ne.s32.totalorder %s108, %s109
      %p118 = scmp.eq.s32.totalorder %s25, 0
      %p119 = por %p117, %p118
      %p120 = scmp.ne.s32.totalorder %s108, %s109
      %p121 = scmp.eq.s32.totalorder %s26, 1
      %p122 = por %p120, %p121
      %p124 = scmp.ne.s32.totalorder %s109, %s123
      %p125 = scmp.eq.s32.totalorder %s26, 0
      %p126 = por %p124, %p125
      %s128 = sadd.s32 %s127, 1
      %p131 = scmp.eq.s32.totalorder %s20, 1
      %p132 = scmp.ne.s32.totalorder %s127, %s129
      %p133 = scmp.eq.s32.totalorder %s20, 0
      %p134 = por %p132, %p133
      %p135 = scmp.ne.s32.totalorder %s127, %s129
      %p136 = scmp.eq.s32.totalorder %s25, 1
      %p137 = por %p135, %p136
      %p138 = scmp.ne.s32.totalorder %s129, %s130
      %p139 = scmp.eq.s32.totalorder %s25, 0
      %p140 = por %p138, %p139
      %p141 = scmp.ne.s32.totalorder %s129, %s130
      %p142 = scmp.eq.s32.totalorder %s26, 1
      %p143 = por %p141, %p142
      %p145 = scmp.ne.s32.totalorder %s130, %s144
      %p146 = scmp.eq.s32.totalorder %s26, 0
      %p147 = por %p145, %p146
      %s149 = sadd.s32 %s148, 1
      %p152 = scmp.eq.s32.totalorder %s20, 1
      %p153 = scmp.ne.s32.totalorder %s148, %s150
      %p154 = scmp.eq.s32.totalorder %s20, 0
      %p155 = por %p153, %p154
      %p156 = scmp.ne.s32.totalorder %s148, %s150
      %p157 = scmp.eq.s32.totalorder %s25, 1
      %p158 = por %p156, %p157
      %p159 = scmp.ne.s32.totalorder %s150, %s151
      %p160 = scmp.eq.s32.totalorder %s25, 0
      %p161 = por %p159, %p160
      %p162 = scmp.ne.s32.totalorder %s150, %s151
      %p163 = scmp.eq.s32.totalorder %s26, 1
      %p164 = por %p162, %p163
      %p166 = scmp.ne.s32.totalorder %s151, %s165
      %p167 = scmp.eq.s32.totalorder %s26, 0
      %p168 = por %p166, %p167
      %s170 = sadd.s32 %s169, 1
      %p173 = scmp.eq.s32.totalorder %s20, 1
      %p174 = scmp.ne.s32.totalorder %s169, %s171
      %p175 = scmp.eq.s32.totalorder %s20, 0
      %p176 = por %p174, %p175
      %p177 = scmp.ne.s32.totalorder %s169, %s171
      %p178 = scmp.eq.s32.totalorder %s25, 1
      %p179 = por %p177, %p178
      %p180 = scmp.ne.s32.totalorder %s171, %s172
      %p181 = scmp.eq.s32.totalorder %s25, 0
      %p182 = por %p180, %p181
      %p183 = scmp.ne.s32.totalorder %s171, %s172
      %p184 = scmp.eq.s32.totalorder %s26, 1
      %p185 = por %p183, %p184
      %p187 = scmp.ne.s32.totalorder %s172, %s186
      %p188 = scmp.eq.s32.totalorder %s26, 0
      %p189 = por %p187, %p188
      %s191 = sadd.s32 %s190, 1
      %p194 = scmp.eq.s32.totalorder %s20, 1
      %p195 = scmp.ne.s32.totalorder %s190, %s192
      %p196 = scmp.eq.s32.totalorder %s20, 0
      %p197 = por %p195, %p196
      %p198 = scmp.ne.s32.totalorder %s190, %s192
      %p199 = scmp.eq.s32.totalorder %s25, 1
      %p200 = por %p198, %p199
      %p201 = scmp.ne.s32.totalorder %s192, %s193
      %p202 = scmp.eq.s32.totalorder %s25, 0
      %p203 = por %p201, %p202
      %p204 = scmp.ne.s32.totalorder %s192, %s193
      %p205 = scmp.eq.s32.totalorder %s26, 1
      %p206 = por %p204, %p205
      %p208 = scmp.ne.s32.totalorder %s193, %s207
      %p209 = scmp.eq.s32.totalorder %s26, 0
      %p210 = por %p208, %p209
      %s212 = sadd.s32 %s211, 1
      %p215 = scmp.eq.s32.totalorder %s20, 1
      %p216 = scmp.ne.s32.totalorder %s211, %s213
      %p217 = scmp.eq.s32.totalorder %s20, 0
      %p218 = por %p216, %p217
      %p219 = scmp.ne.s32.totalorder %s211, %s213
      %p220 = scmp.eq.s32.totalorder %s25, 1
      %p221 = por %p219, %p220
      %p222 = scmp.ne.s32.totalorder %s213, %s214
      %p223 = scmp.eq.s32.totalorder %s25, 0
      %p224 = por %p222, %p223
      %p225 = scmp.ne.s32.totalorder %s213, %s214
      %p226 = scmp.eq.s32.totalorder %s26, 1
      %p227 = por %p225, %p226
      %p229 = scmp.ne.s32.totalorder %s214, %s228
      %p230 = scmp.eq.s32.totalorder %s26, 0
      %p231 = por %p229, %p230
      %s233 = sadd.s32 %s232, 1
      %p236 = scmp.eq.s32.totalorder %s20, 1
      %p237 = scmp.ne.s32.totalorder %s232, %s234
      %p238 = scmp.eq.s32.totalorder %s20, 0
      %p239 = por %p237, %p238
      %p240 = scmp.ne.s32.totalorder %s232, %s234
      %p241 = scmp.eq.s32.totalorder %s25, 1
      %p242 = por %p240, %p241
      %p243 = scmp.ne.s32.totalorder %s234, %s235
      %p244 = scmp.eq.s32.totalorder %s25, 0
      %p245 = por %p243, %p244
      %p246 = scmp.ne.s32.totalorder %s234, %s235
      %p247 = scmp.eq.s32.totalorder %s26, 1
      %p248 = por %p246, %p247
      %p250 = scmp.ne.s32.totalorder %s235, %s249
      %p251 = scmp.eq.s32.totalorder %s26, 0
      %p252 = por %p250, %p251
      %s254 = sadd.s32 %s253, 1
      %p257 = scmp.eq.s32.totalorder %s20, 1
      %p258 = scmp.ne.s32.totalorder %s253, %s255
      %p259 = scmp.eq.s32.totalorder %s20, 0
      %p260 = por %p258, %p259
      %p261 = scmp.ne.s32.totalorder %s253, %s255
      %p262 = scmp.eq.s32.totalorder %s25, 1
      %p263 = por %p261, %p262
      %p264 = scmp.ne.s32.totalorder %s255, %s256
      %p265 = scmp.eq.s32.totalorder %s25, 0
      %p266 = por %p264, %p265
      %p267 = scmp.ne.s32.totalorder %s255, %s256
      %p268 = scmp.eq.s32.totalorder %s26, 1
      %p269 = por %p267, %p268
      %p271 = scmp.ne.s32.totalorder %s256, %s270
      %p272 = scmp.eq.s32.totalorder %s26, 0
      %p273 = por %p271, %p272
      %s274 = ssub.s32 %s20, %s27
      %p275 = scmp.eq.s32.totalorder %s274, 0
      %s277 = sadd.s32 %s276, 1
      %s278 = scalar_select %p275, %s276, %s277
      %p281 = pneg %p275
      %p282 = scmp.eq.s32.totalorder %s20, 1
      %p283 = por %p281, %p282
      %p284 = scmp.ne.s32.totalorder %s276, %s279
      %p285 = scmp.eq.s32.totalorder %s20, 0
      %p286 = por %p284, %p285
      %p287 = scmp.ne.s32.totalorder %s276, %s279
      %p288 = scmp.eq.s32.totalorder %s25, 1
      %p289 = por %p287, %p288
      %p290 = scmp.ne.s32.totalorder %s279, %s280
      %p291 = scmp.eq.s32.totalorder %s25, 0
      %p292 = por %p290, %p291
      %p293 = scmp.ne.s32.totalorder %s279, %s280
      %p294 = scmp.eq.s32.totalorder %s26, 1
      %p295 = por %p293, %p294
      %p297 = scmp.ne.s32.totalorder %s280, %s296
      %p298 = scmp.eq.s32.totalorder %s26, 0
      %p299 = por %p297, %p298
      %p300 = scmp.le.s32.totalorder 1, %s20
      %p301 = scmp.lt.s32.totalorder %s20, 3
      %p302 = pnand %p300, %p301
      %p303 = pneg %p302
      // Predicated region
      $region9: #{decoder_attn_forward.1} parent=5 // pred_check
        _
      $region10: #{decoder_attn_forward.1} parent=5 // pred_check_branch
        %305 = sbr.rel (%p302) target = $region12
      $region11: #{decoder_attn_forward.1} parent=5 // pred_region
        %s306 = ssub.s32 %s20, 1
        // Predicated region
        $region13: #{decoder_attn_forward.1} parent=11 // pred_check
          %p307 = pneg %p119
        $region14: #{decoder_attn_forward.1} parent=11 // pred_check_branch
          %309 = sbr.rel (%p307) target = $region16
        $region15: #{decoder_attn_forward.1} parent=11 // pred_region
          %311 = vsyncadd [#allocation3], 0
          %s312 = sshll.u32 %s3, 4
          %s313 = int_to_ptr.hbm [resolvable:$true] %s312
          %s314 = sshll.u32 [#allocation2], 4
          %s315 = int_to_ptr.vmem [resolvable:$true] %s314
          %320 = dma.hbm_to_vmem [thread:$0]  %s313, 512, %s315, [#allocation3], 128, 128, 8
        $region16: #{decoder_attn_forward.1} parent=11 // pred_fallthru
          _
        // Predicated region
        $region17: #{decoder_attn_forward.1} parent=11 // pred_check
          %p321 = pneg %p140
        $region18: #{decoder_attn_forward.1} parent=11 // pred_check_branch
          %323 = sbr.rel (%p321) target = $region20
        $region19: #{decoder_attn_forward.1} parent=11 // pred_region
          %325 = vsyncadd [#allocation5], 0
          %s326 = sshll.u32 %s4, 4
          %s327 = int_to_ptr.hbm [resolvable:$true] %s326
          %s328 = sshll.u32 [#allocation4], 4
          %s329 = int_to_ptr.vmem [resolvable:$true] %s328
          %334 = dma.hbm_to_vmem [thread:$0]  %s327, 512, %s329, [#allocation5], 128, 128, 8
        $region20: #{decoder_attn_forward.1} parent=11 // pred_fallthru
          _
        // Predicated region
        $region21: #{decoder_attn_forward.1} parent=11 // pred_check
          %p335 = pneg %p161
        $region22: #{decoder_attn_forward.1} parent=11 // pred_check_branch
          %337 = sbr.rel (%p335) target = $region24
        $region23: #{decoder_attn_forward.1} parent=11 // pred_region
          _
        $region24: #{decoder_attn_forward.1} parent=11 // pred_fallthru
          _
        // Predicated region
        $region25: #{decoder_attn_forward.1} parent=11 // pred_check
          %p338 = pneg %p182
        $region26: #{decoder_attn_forward.1} parent=11 // pred_check_branch
          %340 = sbr.rel (%p338) target = $region28
        $region27: #{decoder_attn_forward.1} parent=11 // pred_region
          _
        $region28: #{decoder_attn_forward.1} parent=11 // pred_fallthru
          _
        // Predicated region
        $region29: #{decoder_attn_forward.1} parent=11 // pred_check
          %p341 = pneg %p203
        $region30: #{decoder_attn_forward.1} parent=11 // pred_check_branch
          %343 = sbr.rel (%p341) target = $region32
        $region31: #{decoder_attn_forward.1} parent=11 // pred_region
          %345 = vsyncadd [#allocation5], 0
          %s346 = sshll.u32 %s7, 4
          %s347 = int_to_ptr.hbm [resolvable:$true] %s346
          %s348 = sshll.u32 [#allocation6], 4
          %s349 = int_to_ptr.vmem [resolvable:$true] %s348
          %354 = dma.hbm_to_vmem [thread:$0]  %s347, 512, %s349, [#allocation5], 128, 128, 8
        $region32: #{decoder_attn_forward.1} parent=11 // pred_fallthru
          _
        // Predicated region
        $region33: #{decoder_attn_forward.1} parent=11 // pred_check
          %p355 = pneg %p224
        $region34: #{decoder_attn_forward.1} parent=11 // pred_check_branch
          %357 = sbr.rel (%p355) target = $region36
        $region35: #{decoder_attn_forward.1} parent=11 // pred_region
          %359 = vsyncadd [#allocation8], 0
          %s360 = sshll.u32 %s8, 4
          %s361 = int_to_ptr.hbm [resolvable:$true] %s360
          %s362 = sshll.u32 [#allocation7], 4
          %s363 = int_to_ptr.vmem [resolvable:$true] %s362
          %368 = dma.hbm_to_vmem [thread:$0]  %s361, 512, %s363, [#allocation8], 128, 128, 8
        $region36: #{decoder_attn_forward.1} parent=11 // pred_fallthru
          _
        // Predicated region
        $region37: #{decoder_attn_forward.1} parent=11 // pred_check
          %p369 = pneg %p245
        $region38: #{decoder_attn_forward.1} parent=11 // pred_check_branch
          %371 = sbr.rel (%p369) target = $region40
        $region39: #{decoder_attn_forward.1} parent=11 // pred_region
          _
        $region40: #{decoder_attn_forward.1} parent=11 // pred_fallthru
          _
        // Predicated region
        $region41: #{decoder_attn_forward.1} parent=11 // pred_check
          %p372 = pneg %p266
        $region42: #{decoder_attn_forward.1} parent=11 // pred_check_branch
          %374 = sbr.rel (%p372) target = $region44
        $region43: #{decoder_attn_forward.1} parent=11 // pred_region
          _
        $region44: #{decoder_attn_forward.1} parent=11 // pred_fallthru
          _
      $region12: #{decoder_attn_forward.1} parent=5 // pred_fallthru
        _
      %p375 = scmp.lt.s32.totalorder %s20, 2
      // Predicated region
      $region45: #{decoder_attn_forward.1} parent=5 // pred_check
        %p376 = pneg %p375
      $region46: #{decoder_attn_forward.1} parent=5 // pred_check_branch
        %378 = sbr.rel (%p376) target = $region48
      $region47: #{decoder_attn_forward.1} parent=5 // pred_region
        // Predicated region
        $region49: #{decoder_attn_forward.1} parent=47 // pred_check
          %p379 = pneg %p40
        $region50: #{decoder_attn_forward.1} parent=47 // pred_check_branch
          %381 = sbr.rel (%p379) target = $region52
        $region51: #{decoder_attn_forward.1} parent=47 // pred_region
          %p382 = scmp.lt.s32.totalorder %s20, 1
          %s383 = scalar_select %p382, %s20, 1
          %s384 = smul.addr %s383, 8
          %s385 = scalar_lea.vmem %s0, %s384
        $region52: #{decoder_attn_forward.1} parent=47 // pred_fallthru
          _
        // Predicated region
        $region53: #{decoder_attn_forward.1} parent=47 // pred_check
          %p386 = pneg %p66
        $region54: #{decoder_attn_forward.1} parent=47 // pred_check_branch
          %388 = sbr.rel (%p386) target = $region56
        $region55: #{decoder_attn_forward.1} parent=47 // pred_region
          %p389 = scmp.lt.s32.totalorder %s20, 1
          %s390 = scalar_select %p389, %s20, 1
          %s391 = scalar_lea.vmem %s1, %s390
        $region56: #{decoder_attn_forward.1} parent=47 // pred_fallthru
          _
        // Predicated region
        $region57: #{decoder_attn_forward.1} parent=47 // pred_check
          %p392 = pneg %p92
        $region58: #{decoder_attn_forward.1} parent=47 // pred_check_branch
          %394 = sbr.rel (%p392) target = $region60
        $region59: #{decoder_attn_forward.1} parent=47 // pred_region
          %p395 = scmp.lt.s32.totalorder %s20, 1
          %s396 = scalar_select %p395, %s20, 1
          %s397 = smul.addr %s396, 8
          %s398 = scalar_lea.vmem %s2, %s397
        $region60: #{decoder_attn_forward.1} parent=47 // pred_fallthru
          _
      $region48: #{decoder_attn_forward.1} parent=5 // pred_fallthru
        _
      %p399 = scmp.le.s32.totalorder 1, %s20
      %p400 = scmp.lt.s32.totalorder %s20, 3
      %p401 = pnand %p399, %p400
      %p402 = pneg %p401
      // Predicated region
      $region61: #{decoder_attn_forward.1} parent=5 // pred_check
        _
      $region62: #{decoder_attn_forward.1} parent=5 // pred_check_branch
        %404 = sbr.rel (%p401) target = $region64
      $region63: #{decoder_attn_forward.1} parent=5 // pred_region
        %s405 = ssub.s32 %s20, 1
        // Predicated region
        $region65: #{decoder_attn_forward.1} parent=63 // pred_check
          %p406 = pneg %p119
        $region66: #{decoder_attn_forward.1} parent=63 // pred_check_branch
          %408 = sbr.rel (%p406) target = $region68
        $region67: #{decoder_attn_forward.1} parent=63 // pred_region
          %410 = dma.done [#allocation3], 512
        $region68: #{decoder_attn_forward.1} parent=63 // pred_fallthru
          _
        // Predicated region
        $region69: #{decoder_attn_forward.1} parent=63 // pred_check
          %p411 = pneg %p140
        $region70: #{decoder_attn_forward.1} parent=63 // pred_check_branch
          %413 = sbr.rel (%p411) target = $region72
        $region71: #{decoder_attn_forward.1} parent=63 // pred_region
          %415 = dma.done [#allocation5], 512
        $region72: #{decoder_attn_forward.1} parent=63 // pred_fallthru
          _
        // Predicated region
        $region73: #{decoder_attn_forward.1} parent=63 // pred_check
          %p416 = pneg %p203
        $region74: #{decoder_attn_forward.1} parent=63 // pred_check_branch
          %418 = sbr.rel (%p416) target = $region76
        $region75: #{decoder_attn_forward.1} parent=63 // pred_region
          %420 = dma.done [#allocation5], 512
        $region76: #{decoder_attn_forward.1} parent=63 // pred_fallthru
          _
        // Predicated region
        $region77: #{decoder_attn_forward.1} parent=63 // pred_check
          %p421 = pneg %p224
        $region78: #{decoder_attn_forward.1} parent=63 // pred_check_branch
          %423 = sbr.rel (%p421) target = $region80
        $region79: #{decoder_attn_forward.1} parent=63 // pred_region
          %425 = dma.done [#allocation8], 512
        $region80: #{decoder_attn_forward.1} parent=63 // pred_fallthru
          _
        %p426 = scmp.lt.s32.totalorder %s25, 1
        %s427 = scalar_select %p426, %s25, 1
        %s428 = smul.addr %s427, 8
        %s429 = scalar_lea.vmem %s0, %s428
        %p430 = pneg %p46
        %p431 = pneg %p43
        %p432 = scmp.lt.s32.totalorder %s25, 1
        %s433 = scalar_select %p432, %s25, 1
        %s434 = scalar_lea.vmem %s1, %s433
        %p435 = pneg %p72
        %p436 = pneg %p69
        %p437 = scmp.lt.s32.totalorder %s25, 1
        %s438 = scalar_select %p437, %s25, 1
        %s439 = smul.addr %s438, 8
        %s440 = scalar_lea.vmem %s2, %s439
        %p441 = pneg %p98
        %p442 = pneg %p95
        %p443 = pneg %p119
        %p444 = pneg %p116
        %p445 = pneg %p140
        %p446 = pneg %p137
        %p447 = pneg %p161
        %p448 = pneg %p158
        %p449 = pneg %p182
        %p450 = pneg %p179
        %p451 = pneg %p203
        %p452 = pneg %p200
        %p453 = pneg %p224
        %p454 = pneg %p221
        %p455 = pneg %p245
        %p456 = pneg %p242
        %p457 = pneg %p266
        %p458 = pneg %p263
        %p459 = pneg %p292
        %p460 = pneg %p289
        %p461 = scmp.lt.s32.totalorder %s25, 1
        %s462 = scalar_select %p461, %s25, 1
        %s463 = smul.addr %s462, 2
        %s464 = scalar_lea.vmem %s11, %s463
        %p465 = scmp.lt.s32.totalorder %s25, 1
        %s466 = scalar_select %p465, %s25, 1
        %s467 = smul.addr %s466, 8
        %s468 = scalar_lea.vmem %s0, %s467
        %p469 = scmp.lt.s32.totalorder %s25, 1
        %s470 = scalar_select %p469, %s25, 1
        %s471 = scalar_lea.vmem %s1, %s470
        %p472 = scmp.lt.s32.totalorder %s25, 1
        %s473 = scalar_select %p472, %s25, 1
        %s474 = smul.addr %s473, 8
        %s475 = scalar_lea.vmem %s2, %s474
        %p476 = scmp.lt.s32.totalorder %s25, 1
        %s477 = scalar_select %p476, %s25, 1
        %s478 = smul.addr %s477, 2
        %s479 = scalar_lea.vmem %s11, %s478
        %v480 = vld [vmem:[%s468] sm:$0xff]
        %v481 = vld [vmem:[%s471] sm:$0x1]
        %v482 = vld [vmem:[#allocation2] sm:$0xff]
        %v483 = vld [vmem:[#allocation2 + $0x8] sm:$0xff]
        %v484 = vld [vmem:[#allocation2 + $0x10] sm:$0xff]
        %v485 = vld [vmem:[#allocation2 + $0x18] sm:$0xff]
        %vm486 = vcmask 261120
        %v488 = vsel %vm486, %v480, 0
        %490 = vmatpush.msra.mxu0 0.0
        %491 = vmatpush.msra.mxu0 0.0
        %492 = vmatpush.msra.mxu0 0.0
        %493 = vmatpush.msra.mxu0 0.0
        %494 = vmatpush.msra.mxu0 0.0
        %495 = vmatpush.msra.mxu0 0.0
        %496 = vmatpush.msra.mxu0 0.0
        %497 = vmatpush.msra.mxu0 0.0
        %498 = vmatpush.msra.mxu0 0.0
        %499 = vmatpush.msra.mxu0 0.0
        %500 = vmatpush.msra.mxu0 0.0
        %501 = vmatpush.msra.mxu0 0.0
        %502 = vmatpush.msra.mxu0 %v485
        %503 = vmatpush.msra.mxu0 %v484
        %504 = vmatpush.msra.mxu0 %v483
        %505 = vmatpush.msra.mxu0 %v482
        %506 = vmatmul.f32.gmra.mxu0 %v488
        %v507 = vpop.f32.mrf.mxu0
        %v508 = vadd.f32 0.0, %v507
        %509 = vdwg.mxu0
        %v510 = vld [vmem:[#allocation4] sm:$0xff]
        %v511 = vld [vmem:[#allocation4 + $0x8] sm:$0xff]
        %v512 = vld [vmem:[#allocation4 + $0x10] sm:$0xff]
        %v513 = vld [vmem:[#allocation4 + $0x18] sm:$0xff]
        %v514 = vld [vmem:[%s5] sm:$0x1]
        %v516 = vsel %vm486, %v481, 0
        %518 = vmatpush.msra.mxu0 0.0
        %519 = vmatpush.msra.mxu0 0.0
        %520 = vmatpush.msra.mxu0 0.0
        %521 = vmatpush.msra.mxu0 0.0
        %522 = vmatpush.msra.mxu0 0.0
        %523 = vmatpush.msra.mxu0 0.0
        %524 = vmatpush.msra.mxu0 0.0
        %525 = vmatpush.msra.mxu0 0.0
        %526 = vmatpush.msra.mxu0 0.0
        %527 = vmatpush.msra.mxu0 0.0
        %528 = vmatpush.msra.mxu0 0.0
        %529 = vmatpush.msra.mxu0 0.0
        %530 = vmatpush.msra.mxu0 %v513
        %531 = vmatpush.msra.mxu0 %v512
        %532 = vmatpush.msra.mxu0 %v511
        %533 = vmatpush.msra.mxu0 %v510
        %534 = vmatmul.f32.gmra.mxu0 %v516
        %v535 = vpop.f32.mrf.mxu0
        %v536 = vadd.f32 %v514, %v535
        %537 = vdwg.mxu0
        %v538 = vperm.slane %v536, 0
        %v539 = vadd.f32 %v508, %v538
        %v540 = vtanh.pop %v539
        %v541 = vld [vmem:[%s6] sm:$0x1]
        %v543 = vperm.slane %v541, 0
        %v545 = vmul.f32 %v540, %v543
        %v546 = vsel %vm486, %v545, 0.0
        %547 = vadd.xlane.f32.xlu0 %v546
        %v548 = vpop.xlane.xlu0 %547
        %v549 = vld [vmem:[%s475] sm:$0xff]
        %v550 = vadd.f32 %v548, %v549
        %vm551 = vcmask 7168
        %v552 = vsel %vm551, %v550, -inf
        %v553 = vrot.slane %v552, 4
        %v554 = vmax.f32 %v552, %v553
        %v555 = vrot.slane %v554, 2
        %v556 = vmax.f32 %v554, %v555
        %v557 = vrot.slane %v556, 1
        %v558 = vmax.f32 %v556, %v557
        %v559 = vsub.f32 %v550, %v558
        %v560 = vmul.f32 %v559, 1.442695
        %v561 = vpow.pop %v560
        %v562 = vsel %vm551, %v561, 0.0
        %v563 = vrot.slane %v562, 4
        %v564 = vadd.f32 %v562, %v563
        %v565 = vrot.slane %v564, 2
        %v566 = vadd.f32 %v564, %v565
        %v567 = vrot.slane %v566, 1
        %v568 = vadd.f32 %v566, %v567
        %v569 = vrcp.pop %v568
        %v570 = vmul.f32 %v561, %v569
        %572 = vset.pattern.permute.xlu0 0
        %573 = vperm.xlu0 %572, %v570
        %v574 = vpop.permute.xlu0 %573
        %v576 = vmul.f32 %v574, %v480
        %v577 = vld [vmem:[#allocation6] sm:$0xff]
        %v578 = vld [vmem:[#allocation6 + $0x8] sm:$0xff]
        %v579 = vld [vmem:[#allocation6 + $0x10] sm:$0xff]
        %v580 = vld [vmem:[#allocation6 + $0x18] sm:$0xff]
        %v581 = vld [vmem:[%s9] sm:$0x1]
        %v583 = vperm.slane %v581, 0
        %v586 = vsel %vm486, %v576, 0
        %588 = vmatpush.msra.mxu0 0.0
        %589 = vmatpush.msra.mxu0 0.0
        %590 = vmatpush.msra.mxu0 0.0
        %591 = vmatpush.msra.mxu0 0.0
        %592 = vmatpush.msra.mxu0 0.0
        %593 = vmatpush.msra.mxu0 0.0
        %594 = vmatpush.msra.mxu0 0.0
        %595 = vmatpush.msra.mxu0 0.0
        %596 = vmatpush.msra.mxu0 0.0
        %597 = vmatpush.msra.mxu0 0.0
        %598 = vmatpush.msra.mxu0 0.0
        %599 = vmatpush.msra.mxu0 0.0
        %600 = vmatpush.msra.mxu0 %v580
        %601 = vmatpush.msra.mxu0 %v579
        %602 = vmatpush.msra.mxu0 %v578
        %603 = vmatpush.msra.mxu0 %v577
        %604 = vmatmul.f32.gmra.mxu0 %v586
        %v605 = vpop.f32.mrf.mxu0
        %v606 = vadd.f32 %v583, %v605
        %607 = vdwg.mxu0
        %v608 = vld [vmem:[#allocation7] sm:$0xff]
        %v609 = vld [vmem:[#allocation7 + $0x8] sm:$0xff]
        %v610 = vld [vmem:[#allocation7 + $0x10] sm:$0xff]
        %v611 = vld [vmem:[#allocation7 + $0x18] sm:$0xff]
        %v612 = vld [vmem:[%s10] sm:$0x1]
        %613 = vmatpush.msra.mxu0 0.0
        %614 = vmatpush.msra.mxu0 0.0
        %615 = vmatpush.msra.mxu0 0.0
        %616 = vmatpush.msra.mxu0 0.0
        %617 = vmatpush.msra.mxu0 0.0
        %618 = vmatpush.msra.mxu0 0.0
        %619 = vmatpush.msra.mxu0 0.0
        %620 = vmatpush.msra.mxu0 0.0
        %621 = vmatpush.msra.mxu0 0.0
        %622 = vmatpush.msra.mxu0 0.0
        %623 = vmatpush.msra.mxu0 0.0
        %624 = vmatpush.msra.mxu0 0.0
        %625 = vmatpush.msra.mxu0 %v611
        %626 = vmatpush.msra.mxu0 %v610
        %627 = vmatpush.msra.mxu0 %v609
        %628 = vmatpush.msra.mxu0 %v608
        %629 = vmatmul.f32.gmra.mxu0 %v516
        %v630 = vpop.f32.mrf.mxu0
        %v631 = vadd.f32 0.0, %v630
        %632 = vdwg.mxu0
        %v633 = vadd.f32 %v606, %v631
        %v634 = vxor.u32 %v633, 2147483648
        %v635 = vmul.f32 %v634, 1.442695
        %v636 = vpow.pop %v635
        %v637 = vadd.f32 %v636, 1.0
        %v638 = vrcp.pop %v637
        %v639 = vmul.f32 %v637, %v638
        %v640 = vsub.f32 1.0, %v639
        %v641 = vmul.f32 %v638, %v640
        %v642 = vadd.f32 %v638, %v641
        %vm643 = vweird.f32 %v637
        %vm644 = vweird.f32 %v638
        %vm645 = vmor %vm643, %vm644
        %v646 = vsel %vm645, %v638, %v642
        %v647 = vand.u32 2147483647, %v637
        %vm648 = vcmp.eq.f32.partialorder %v647, 8.507059e+37
        %v649 = vand.u32 %v637, 2147483648
        %v650 = vor.u32 1.1754944e-38, %v649
        %v651 = vsel %vm648, %v650, %v646
        %v652 = vmul.f32 1.0, %v651
        %v654 = vperm.slane %v612, 0
        %655 = vrot.lane.b32.xlu0 %v654, 64
        %v656 = vpop.permute.xlu0 %655
        %v658 = vadd.f32 %v631, %v656
        %660 = vrot.lane.b32.xlu0 %v658, 64
        %v661 = vpop.permute.xlu0 %660
        %v663 = vmul.f32 %v652, %v661
        %665 = vrot.lane.b32.xlu0 %v663, 64
        %v666 = vpop.permute.xlu0 %665
        %v668 = vadd.f32 %v606, %v666
        %v669 = vtanh.pop %v668
        %v670 = vsub.f32 1.0, %v652
        %672 = vrot.lane.b32.xlu0 %v669, 96
        %v673 = vpop.permute.xlu0 %672
        %v675 = vmul.f32 %v670, %v673
        %v676 = vperm.slane %v481, 0
        %677 = vrot.lane.b32.xlu0 %v676, 32
        %v678 = vpop.permute.xlu0 %677
        %v680 = vmul.f32 %v652, %v678
        %v681 = vadd.f32 %v675, %v680
        %683 = vrot.lane.b32.xlu0 %v681, 96
        %v684 = vpop.permute.xlu0 %683
        %v685 = vsel %vm486, %v684, 0
        %687 = vmatpush.msra.mxu0 0.0
        %688 = vmatpush.msra.mxu0 0.0
        %689 = vmatpush.msra.mxu0 0.0
        %690 = vmatpush.msra.mxu0 0.0
        %691 = vmatpush.msra.mxu0 0.0
        %692 = vmatpush.msra.mxu0 0.0
        %693 = vmatpush.msra.mxu0 0.0
        %694 = vmatpush.msra.mxu0 0.0
        %695 = vmatpush.msra.mxu0 0.0
        %696 = vmatpush.msra.mxu0 0.0
        %697 = vmatpush.msra.mxu0 0.0
        %698 = vmatpush.msra.mxu0 0.0
        %699 = vmatpush.msra.mxu0 %v611
        %700 = vmatpush.msra.mxu0 %v610
        %701 = vmatpush.msra.mxu0 %v609
        %702 = vmatpush.msra.mxu0 %v608
        %703 = vmatmul.f32.gmra.mxu0 %v685
        %v704 = vpop.f32.mrf.mxu0
        %v705 = vadd.f32 0.0, %v704
        %706 = vdwg.mxu0
        %v708 = vrot.slane %v705, 7
        %v710 = vadd.f32 %v606, %v708
        %v711 = vxor.u32 %v710, 2147483648
        %v712 = vmul.f32 %v711, 1.442695
        %v713 = vpow.pop %v712
        %v714 = vadd.f32 %v713, 1.0
        %v715 = vrcp.pop %v714
        %v716 = vmul.f32 %v714, %v715
        %v717 = vsub.f32 1.0, %v716
        %v718 = vmul.f32 %v715, %v717
        %v719 = vadd.f32 %v715, %v718
        %vm720 = vweird.f32 %v714
        %vm721 = vweird.f32 %v715
        %vm722 = vmor %vm720, %vm721
        %v723 = vsel %vm722, %v715, %v719
        %v724 = vand.u32 2147483647, %v714
        %vm725 = vcmp.eq.f32.partialorder %v724, 8.507059e+37
        %v726 = vand.u32 %v714, 2147483648
        %v727 = vor.u32 1.1754944e-38, %v726
        %v728 = vsel %vm725, %v727, %v723
        %v729 = vmul.f32 1.0, %v728
        %v730 = vadd.f32 %v705, %v656
        %v732 = vrot.slane %v730, 7
        %733 = vrot.lane.b32.xlu0 %v732, 64
        %v734 = vpop.permute.xlu0 %733
        %v736 = vmul.f32 %v729, %v734
        %738 = vrot.lane.b32.xlu0 %v736, 64
        %v739 = vpop.permute.xlu0 %738
        %v741 = vadd.f32 %v606, %v739
        %v742 = vtanh.pop %v741
        %v743 = vsub.f32 1.0, %v729
        %745 = vrot.lane.b32.xlu0 %v742, 96
        %v746 = vpop.permute.xlu0 %745
        %v748 = vmul.f32 %v743, %v746
        %v749 = vrot.slane %v681, 7
        %v751 = vmul.f32 %v729, %v749
        %v752 = vadd.f32 %v748, %v751
        %v754 = vrot.slane %v752, 1
        %755 = vrot.lane.b32.xlu0 %v754, 96
        %v756 = vpop.permute.xlu0 %755
        %v757 = vsel %vm486, %v756, 0
        %759 = vmatpush.msra.mxu0 0.0
        %760 = vmatpush.msra.mxu0 0.0
        %761 = vmatpush.msra.mxu0 0.0
        %762 = vmatpush.msra.mxu0 0.0
        %763 = vmatpush.msra.mxu0 0.0
        %764 = vmatpush.msra.mxu0 0.0
        %765 = vmatpush.msra.mxu0 0.0
        %766 = vmatpush.msra.mxu0 0.0
        %767 = vmatpush.msra.mxu0 0.0
        %768 = vmatpush.msra.mxu0 0.0
        %769 = vmatpush.msra.mxu0 0.0
        %770 = vmatpush.msra.mxu0 0.0
        %771 = vmatpush.msra.mxu0 %v611
        %772 = vmatpush.msra.mxu0 %v610
        %773 = vmatpush.msra.mxu0 %v609
        %774 = vmatpush.msra.mxu0 %v608
        %775 = vmatmul.f32.gmra.mxu0 %v757
        %v776 = vpop.f32.mrf.mxu0
        %v777 = vadd.f32 0.0, %v776
        %778 = vdwg.mxu0
        %v780 = vrot.slane %v777, 6
        %v782 = vadd.f32 %v606, %v780
        %v783 = vxor.u32 %v782, 2147483648
        %v784 = vmul.f32 %v783, 1.442695
        %v785 = vpow.pop %v784
        %v786 = vadd.f32 %v785, 1.0
        %v787 = vrcp.pop %v786
        %v788 = vmul.f32 %v786, %v787
        %v789 = vsub.f32 1.0, %v788
        %v790 = vmul.f32 %v787, %v789
        %v791 = vadd.f32 %v787, %v790
        %vm792 = vweird.f32 %v786
        %vm793 = vweird.f32 %v787
        %vm794 = vmor %vm792, %vm793
        %v795 = vsel %vm794, %v787, %v791
        %v796 = vand.u32 2147483647, %v786
        %vm797 = vcmp.eq.f32.partialorder %v796, 8.507059e+37
        %v798 = vand.u32 %v786, 2147483648
        %v799 = vor.u32 1.1754944e-38, %v798
        %v800 = vsel %vm797, %v799, %v795
        %v801 = vmul.f32 1.0, %v800
        %v802 = vadd.f32 %v777, %v656
        %v804 = vrot.slane %v802, 6
        %805 = vrot.lane.b32.xlu0 %v804, 64
        %v806 = vpop.permute.xlu0 %805
        %v808 = vmul.f32 %v801, %v806
        %810 = vrot.lane.b32.xlu0 %v808, 64
        %v811 = vpop.permute.xlu0 %810
        %v813 = vadd.f32 %v606, %v811
        %v814 = vtanh.pop %v813
        %v815 = vsub.f32 1.0, %v801
        %817 = vrot.lane.b32.xlu0 %v814, 96
        %v818 = vpop.permute.xlu0 %817
        %v820 = vmul.f32 %v815, %v818
        %v821 = vrot.slane %v752, 7
        %v823 = vmul.f32 %v801, %v821
        %v824 = vadd.f32 %v820, %v823
        %v826 = vrot.slane %v824, 2
        %827 = vrot.lane.b32.xlu0 %v826, 96
        %v828 = vpop.permute.xlu0 %827
        %v829 = vsel %vm486, %v828, 0
        %831 = vmatpush.msra.mxu0 0.0
        %832 = vmatpush.msra.mxu0 0.0
        %833 = vmatpush.msra.mxu0 0.0
        %834 = vmatpush.msra.mxu0 0.0
        %835 = vmatpush.msra.mxu0 0.0
        %836 = vmatpush.msra.mxu0 0.0
        %837 = vmatpush.msra.mxu0 0.0
        %838 = vmatpush.msra.mxu0 0.0
        %839 = vmatpush.msra.mxu0 0.0
        %840 = vmatpush.msra.mxu0 0.0
        %841 = vmatpush.msra.mxu0 0.0
        %842 = vmatpush.msra.mxu0 0.0
        %843 = vmatpush.msra.mxu0 %v611
        %844 = vmatpush.msra.mxu0 %v610
        %845 = vmatpush.msra.mxu0 %v609
        %846 = vmatpush.msra.mxu0 %v608
        %847 = vmatmul.f32.gmra.mxu0 %v829
        %v848 = vpop.f32.mrf.mxu0
        %v849 = vadd.f32 0.0, %v848
        %850 = vdwg.mxu0
        %v852 = vrot.slane %v849, 5
        %v854 = vadd.f32 %v606, %v852
        %v855 = vxor.u32 %v854, 2147483648
        %v856 = vmul.f32 %v855, 1.442695
        %v857 = vpow.pop %v856
        %v858 = vadd.f32 %v857, 1.0
        %v859 = vrcp.pop %v858
        %v860 = vmul.f32 %v858, %v859
        %v861 = vsub.f32 1.0, %v860
        %v862 = vmul.f32 %v859, %v861
        %v863 = vadd.f32 %v859, %v862
        %vm864 = vweird.f32 %v858
        %vm865 = vweird.f32 %v859
        %vm866 = vmor %vm864, %vm865
        %v867 = vsel %vm866, %v859, %v863
        %v868 = vand.u32 2147483647, %v858
        %vm869 = vcmp.eq.f32.partialorder %v868, 8.507059e+37
        %v870 = vand.u32 %v858, 2147483648
        %v871 = vor.u32 1.1754944e-38, %v870
        %v872 = vsel %vm869, %v871, %v867
        %v873 = vmul.f32 1.0, %v872
        %v874 = vadd.f32 %v849, %v656
        %v876 = vrot.slane %v874, 5
        %877 = vrot.lane.b32.xlu0 %v876, 64
        %v878 = vpop.permute.xlu0 %877
        %v880 = vmul.f32 %v873, %v878
        %882 = vrot.lane.b32.xlu0 %v880, 64
        %v883 = vpop.permute.xlu0 %882
        %v885 = vadd.f32 %v606, %v883
        %v886 = vtanh.pop %v885
        %v887 = vsub.f32 1.0, %v873
        %889 = vrot.lane.b32.xlu0 %v886, 96
        %v890 = vpop.permute.xlu0 %889
        %v892 = vmul.f32 %v887, %v890
        %v893 = vrot.slane %v824, 7
        %v895 = vmul.f32 %v873, %v893
        %v896 = vadd.f32 %v892, %v895
        %v898 = vrot.slane %v896, 3
        %899 = vrot.lane.b32.xlu0 %v898, 96
        %v900 = vpop.permute.xlu0 %899
        %v901 = vsel %vm486, %v900, 0
        %903 = vmatpush.msra.mxu0 0.0
        %904 = vmatpush.msra.mxu0 0.0
        %905 = vmatpush.msra.mxu0 0.0
        %906 = vmatpush.msra.mxu0 0.0
        %907 = vmatpush.msra.mxu0 0.0
        %908 = vmatpush.msra.mxu0 0.0
        %909 = vmatpush.msra.mxu0 0.0
        %910 = vmatpush.msra.mxu0 0.0
        %911 = vmatpush.msra.mxu0 0.0
        %912 = vmatpush.msra.mxu0 0.0
        %913 = vmatpush.msra.mxu0 0.0
        %914 = vmatpush.msra.mxu0 0.0
        %915 = vmatpush.msra.mxu0 %v611
        %916 = vmatpush.msra.mxu0 %v610
        %917 = vmatpush.msra.mxu0 %v609
        %918 = vmatpush.msra.mxu0 %v608
        %919 = vmatmul.f32.gmra.mxu0 %v901
        %v920 = vpop.f32.mrf.mxu0
        %v921 = vadd.f32 0.0, %v920
        %922 = vdwg.mxu0
        %v924 = vrot.slane %v921, 4
        %v926 = vadd.f32 %v606, %v924
        %v927 = vxor.u32 %v926, 2147483648
        %v928 = vmul.f32 %v927, 1.442695
        %v929 = vpow.pop %v928
        %v930 = vadd.f32 %v929, 1.0
        %v931 = vrcp.pop %v930
        %v932 = vmul.f32 %v930, %v931
        %v933 = vsub.f32 1.0, %v932
        %v934 = vmul.f32 %v931, %v933
        %v935 = vadd.f32 %v931, %v934
        %vm936 = vweird.f32 %v930
        %vm937 = vweird.f32 %v931
        %vm938 = vmor %vm936, %vm937
        %v939 = vsel %vm938, %v931, %v935
        %v940 = vand.u32 2147483647, %v930
        %vm941 = vcmp.eq.f32.partialorder %v940, 8.507059e+37
        %v942 = vand.u32 %v930, 2147483648
        %v943 = vor.u32 1.1754944e-38, %v942
        %v944 = vsel %vm941, %v943, %v939
        %v945 = vmul.f32 1.0, %v944
        %v946 = vadd.f32 %v921, %v656
        %v948 = vrot.slane %v946, 4
        %949 = vrot.lane.b32.xlu0 %v948, 64
        %v950 = vpop.permute.xlu0 %949
        %v952 = vmul.f32 %v945, %v950
        %954 = vrot.lane.b32.xlu0 %v952, 64
        %v955 = vpop.permute.xlu0 %954
        %v957 = vadd.f32 %v606, %v955
        %v958 = vtanh.pop %v957
        %v959 = vsub.f32 1.0, %v945
        %961 = vrot.lane.b32.xlu0 %v958, 96
        %v962 = vpop.permute.xlu0 %961
        %v964 = vmul.f32 %v959, %v962
        %v965 = vrot.slane %v896, 7
        %v967 = vmul.f32 %v945, %v965
        %v968 = vadd.f32 %v964, %v967
        %v970 = vrot.slane %v968, 4
        %971 = vrot.lane.b32.xlu0 %v970, 96
        %v972 = vpop.permute.xlu0 %971
        %v973 = vsel %vm486, %v972, 0
        %975 = vmatpush.msra.mxu0 0.0
        %976 = vmatpush.msra.mxu0 0.0
        %977 = vmatpush.msra.mxu0 0.0
        %978 = vmatpush.msra.mxu0 0.0
        %979 = vmatpush.msra.mxu0 0.0
        %980 = vmatpush.msra.mxu0 0.0
        %981 = vmatpush.msra.mxu0 0.0
        %982 = vmatpush.msra.mxu0 0.0
        %983 = vmatpush.msra.mxu0 0.0
        %984 = vmatpush.msra.mxu0 0.0
        %985 = vmatpush.msra.mxu0 0.0
        %986 = vmatpush.msra.mxu0 0.0
        %987 = vmatpush.msra.mxu0 %v611
        %988 = vmatpush.msra.mxu0 %v610
        %989 = vmatpush.msra.mxu0 %v609
        %990 = vmatpush.msra.mxu0 %v608
        %991 = vmatmul.f32.gmra.mxu0 %v973
        %v992 = vpop.f32.mrf.mxu0
        %v993 = vadd.f32 0.0, %v992
        %994 = vdwg.mxu0
        %v996 = vrot.slane %v993, 3
        %v998 = vadd.f32 %v606, %v996
        %v999 = vxor.u32 %v998, 2147483648
        %v1000 = vmul.f32 %v999, 1.442695
        %v1001 = vpow.pop %v1000
        %v1002 = vadd.f32 %v1001, 1.0
        %v1003 = vrcp.pop %v1002
        %v1004 = vmul.f32 %v1002, %v1003
        %v1005 = vsub.f32 1.0, %v1004
        %v1006 = vmul.f32 %v1003, %v1005
        %v1007 = vadd.f32 %v1003, %v1006
        %vm1008 = vweird.f32 %v1002
        %vm1009 = vweird.f32 %v1003
        %vm1010 = vmor %vm1008, %vm1009
        %v1011 = vsel %vm1010, %v1003, %v1007
        %v1012 = vand.u32 2147483647, %v1002
        %vm1013 = vcmp.eq.f32.partialorder %v1012, 8.507059e+37
        %v1014 = vand.u32 %v1002, 2147483648
        %v1015 = vor.u32 1.1754944e-38, %v1014
        %v1016 = vsel %vm1013, %v1015, %v1011
        %v1017 = vmul.f32 1.0, %v1016
        %v1018 = vadd.f32 %v993, %v656
        %v1020 = vrot.slane %v1018, 3
        %1021 = vrot.lane.b32.xlu0 %v1020, 64
        %v1022 = vpop.permute.xlu0 %1021
        %v1024 = vmul.f32 %v1017, %v1022
        %1026 = vrot.lane.b32.xlu0 %v1024, 64
        %v1027 = vpop.permute.xlu0 %1026
        %v1029 = vadd.f32 %v606, %v1027
        %v1030 = vtanh.pop %v1029
        %v1031 = vsub.f32 1.0, %v1017
        %1033 = vrot.lane.b32.xlu0 %v1030, 96
        %v1034 = vpop.permute.xlu0 %1033
        %v1036 = vmul.f32 %v1031, %v1034
        %v1037 = vrot.slane %v968, 7
        %v1039 = vmul.f32 %v1017, %v1037
        %v1040 = vadd.f32 %v1036, %v1039
        %v1042 = vrot.slane %v1040, 5
        %1043 = vrot.lane.b32.xlu0 %v1042, 96
        %v1044 = vpop.permute.xlu0 %1043
        %v1045 = vsel %vm486, %v1044, 0
        %1047 = vmatpush.msra.mxu0 0.0
        %1048 = vmatpush.msra.mxu0 0.0
        %1049 = vmatpush.msra.mxu0 0.0
        %1050 = vmatpush.msra.mxu0 0.0
        %1051 = vmatpush.msra.mxu0 0.0
        %1052 = vmatpush.msra.mxu0 0.0
        %1053 = vmatpush.msra.mxu0 0.0
        %1054 = vmatpush.msra.mxu0 0.0
        %1055 = vmatpush.msra.mxu0 0.0
        %1056 = vmatpush.msra.mxu0 0.0
        %1057 = vmatpush.msra.mxu0 0.0
        %1058 = vmatpush.msra.mxu0 0.0
        %1059 = vmatpush.msra.mxu0 %v611
        %1060 = vmatpush.msra.mxu0 %v610
        %1061 = vmatpush.msra.mxu0 %v609
        %1062 = vmatpush.msra.mxu0 %v608
        %1063 = vmatmul.f32.gmra.mxu0 %v1045
        %v1064 = vpop.f32.mrf.mxu0
        %v1065 = vadd.f32 0.0, %v1064
        %1066 = vdwg.mxu0
        %v1068 = vrot.slane %v1065, 2
        %v1070 = vadd.f32 %v606, %v1068
        %v1071 = vxor.u32 %v1070, 2147483648
        %v1072 = vmul.f32 %v1071, 1.442695
        %v1073 = vpow.pop %v1072
        %v1074 = vadd.f32 %v1073, 1.0
        %v1075 = vrcp.pop %v1074
        %v1076 = vmul.f32 %v1074, %v1075
        %v1077 = vsub.f32 1.0, %v1076
        %v1078 = vmul.f32 %v1075, %v1077
        %v1079 = vadd.f32 %v1075, %v1078
        %vm1080 = vweird.f32 %v1074
        %vm1081 = vweird.f32 %v1075
        %vm1082 = vmor %vm1080, %vm1081
        %v1083 = vsel %vm1082, %v1075, %v1079
        %v1084 = vand.u32 2147483647, %v1074
        %vm1085 = vcmp.eq.f32.partialorder %v1084, 8.507059e+37
        %v1086 = vand.u32 %v1074, 2147483648
        %v1087 = vor.u32 1.1754944e-38, %v1086
        %v1088 = vsel %vm1085, %v1087, %v1083
        %v1089 = vmul.f32 1.0, %v1088
        %v1090 = vadd.f32 %v1065, %v656
        %v1092 = vrot.slane %v1090, 2
        %1093 = vrot.lane.b32.xlu0 %v1092, 64
        %v1094 = vpop.permute.xlu0 %1093
        %v1096 = vmul.f32 %v1089, %v1094
        %1098 = vrot.lane.b32.xlu0 %v1096, 64
        %v1099 = vpop.permute.xlu0 %1098
        %v1101 = vadd.f32 %v606, %v1099
        %v1102 = vtanh.pop %v1101
        %v1103 = vsub.f32 1.0, %v1089
        %1105 = vrot.lane.b32.xlu0 %v1102, 96
        %v1106 = vpop.permute.xlu0 %1105
        %v1108 = vmul.f32 %v1103, %v1106
        %v1109 = vrot.slane %v1040, 7
        %v1111 = vmul.f32 %v1089, %v1109
        %v1112 = vadd.f32 %v1108, %v1111
        %v1114 = vrot.slane %v1112, 6
        %1115 = vrot.lane.b32.xlu0 %v1114, 96
        %v1116 = vpop.permute.xlu0 %1115
        %v1117 = vsel %vm486, %v1116, 0
        %1119 = vmatpush.msra.mxu0 0.0
        %1120 = vmatpush.msra.mxu0 0.0
        %1121 = vmatpush.msra.mxu0 0.0
        %1122 = vmatpush.msra.mxu0 0.0
        %1123 = vmatpush.msra.mxu0 0.0
        %1124 = vmatpush.msra.mxu0 0.0
        %1125 = vmatpush.msra.mxu0 0.0
        %1126 = vmatpush.msra.mxu0 0.0
        %1127 = vmatpush.msra.mxu0 0.0
        %1128 = vmatpush.msra.mxu0 0.0
        %1129 = vmatpush.msra.mxu0 0.0
        %1130 = vmatpush.msra.mxu0 0.0
        %1131 = vmatpush.msra.mxu0 %v611
        %1132 = vmatpush.msra.mxu0 %v610
        %1133 = vmatpush.msra.mxu0 %v609
        %1134 = vmatpush.msra.mxu0 %v608
        %1135 = vmatmul.f32.gmra.mxu0 %v1117
        %v1136 = vpop.f32.mrf.mxu0
        %v1137 = vadd.f32 0.0, %v1136
        %1138 = vdwg.mxu0
        %v1140 = vrot.slane %v1137, 1
        %v1142 = vadd.f32 %v606, %v1140
        %v1143 = vxor.u32 %v1142, 2147483648
        %v1144 = vmul.f32 %v1143, 1.442695
        %v1145 = vpow.pop %v1144
        %v1146 = vadd.f32 %v1145, 1.0
        %v1147 = vrcp.pop %v1146
        %v1148 = vmul.f32 %v1146, %v1147
        %v1149 = vsub.f32 1.0, %v1148
        %v1150 = vmul.f32 %v1147, %v1149
        %v1151 = vadd.f32 %v1147, %v1150
        %vm1152 = vweird.f32 %v1146
        %vm1153 = vweird.f32 %v1147
        %vm1154 = vmor %vm1152, %vm1153
        %v1155 = vsel %vm1154, %v1147, %v1151
        %v1156 = vand.u32 2147483647, %v1146
        %vm1157 = vcmp.eq.f32.partialorder %v1156, 8.507059e+37
        %v1158 = vand.u32 %v1146, 2147483648
        %v1159 = vor.u32 1.1754944e-38, %v1158
        %v1160 = vsel %vm1157, %v1159, %v1155
        %v1161 = vmul.f32 1.0, %v1160
        %v1162 = vadd.f32 %v1137, %v656
        %v1164 = vrot.slane %v1162, 1
        %1165 = vrot.lane.b32.xlu0 %v1164, 64
        %v1166 = vpop.permute.xlu0 %1165
        %v1168 = vmul.f32 %v1161, %v1166
        %1170 = vrot.lane.b32.xlu0 %v1168, 64
        %v1171 = vpop.permute.xlu0 %1170
        %v1173 = vadd.f32 %v606, %v1171
        %v1174 = vtanh.pop %v1173
        %v1175 = vsub.f32 1.0, %v1161
        %1177 = vrot.lane.b32.xlu0 %v1174, 96
        %v1178 = vpop.permute.xlu0 %1177
        %v1180 = vmul.f32 %v1175, %v1178
        %v1181 = vrot.slane %v1112, 7
        %v1183 = vmul.f32 %v1161, %v1181
        %v1184 = vadd.f32 %v1180, %v1183
        %1187 = vrot.lane.b32.xlu0 %v826, 32
        %v1188 = vpop.permute.xlu0 %1187
        %1190 = vrot.lane.b32.xlu0 %v898, 64
        %v1191 = vpop.permute.xlu0 %1190
        %1195 = vrot.lane.b32.xlu0 %v1114, 32
        %v1196 = vpop.permute.xlu0 %1195
        %v1199 = vrot.slane %v1184, 7
        %1200 = vrot.lane.b32.xlu0 %v1199, 64
        %v1201 = vpop.permute.xlu0 %1200
        %v1203 = vsel %vm486, %v684, %v754
        %vm1204 = vcmask 523264
        %v1205 = vsel %vm1204, %v1203, %v1188
        %vm1206 = vcmask 785408
        %v1207 = vsel %vm1206, %v1205, %v1191
        %v1208 = vsel %vm486, %v972, %v1042
        %v1209 = vsel %vm1204, %v1208, %v1196
        %v1210 = vsel %vm1206, %v1209, %v1201
        %v1213 = vrot.slane %v1210, 7
        %vm1214 = vcmask 1040384
        %v1215 = vsel %vm1214, %v1207, %v1213
        %v1217 = vlaneseq
        %vm1218 = vcmp.ge.s32.totalorder %v1217, 0
        %vm1219 = vcmp.lt.s32.totalorder %v1217, 256
        %vm1220 = vmand %vm1218, %vm1219
        %1221 = vst.msk [vmem:[%s479] sm:$0x3] %vm1220, %v1215
        %p1222 = scmp.lt.s32.totalorder %s25, 1
        %s1223 = scalar_select %p1222, %s25, 1
        %s1224 = smul.addr %s1223, 2
        %s1225 = scalar_lea.vmem %s11, %s1224
        // Predicated region
        $region81: #{decoder_attn_forward.1} parent=63 // pred_check
          %p1226 = pneg %p289
        $region82: #{decoder_attn_forward.1} parent=63 // pred_check_branch
          %1228 = sbr.rel (%p1226) target = $region84
        $region83: #{decoder_attn_forward.1} parent=63 // pred_region
          _
        $region84: #{decoder_attn_forward.1} parent=63 // pred_fallthru
          _
      $region64: #{decoder_attn_forward.1} parent=5 // pred_fallthru
        _
      %p1229 = scmp.le.s32.totalorder 2, %s20
      // Predicated region
      $region85: #{decoder_attn_forward.1} parent=5 // pred_check
        %p1230 = pneg %p1229
      $region86: #{decoder_attn_forward.1} parent=5 // pred_check_branch
        %1232 = sbr.rel (%p1230) target = $region88
      $region87: #{decoder_attn_forward.1} parent=5 // pred_region
        %s1233 = ssub.s32 %s20, 2
        // Predicated region
        $region89: #{decoder_attn_forward.1} parent=87 // pred_check
          %p1234 = pneg %p295
        $region90: #{decoder_attn_forward.1} parent=87 // pred_check_branch
          %1236 = sbr.rel (%p1234) target = $region92
        $region91: #{decoder_attn_forward.1} parent=87 // pred_region
          %p1237 = scmp.lt.s32.totalorder %s26, 1
          %s1238 = scalar_select %p1237, %s26, 1
          %s1239 = smul.addr %s1238, 2
          %s1240 = scalar_lea.vmem %s11, %s1239
        $region92: #{decoder_attn_forward.1} parent=87 // pred_fallthru
          _
      $region88: #{decoder_attn_forward.1} parent=5 // pred_fallthru
        _
    $region6: #{decoder_attn_forward.1} parent=1 // loop_footer
      %s24 = sadd.s32 1, %s20
    $region7: #{decoder_attn_forward.1} parent=1 // loop_footer_branch
      %19 = sbr.rel target = $region3
    $region8: #{decoder_attn_forward.1} parent=1 // loop_exit
      _
    %1241 = vsyncpa [#allocation3], 1
    %s1242 = scalar_lea.sflag [#allocation3], 1
    %1243 = vsyncpa %s1242, 1
    %1244 = vsyncpa [#allocation5], 1
    %1245 = vsyncpa [#allocation8], 1

</llo_original>
